<compile_context>
chip_gen: v5e
topology: v5e:2x2
jax: 0.10.0
libtpu: 0.0.40
codegen_flags: <defaults>
</compile_context>

<pallas_src>
import functools

import jax
import jax.numpy as jnp
from jax.experimental import pallas as pl
from jax.experimental.pallas import tpu as pltpu


def _block_lstm_kernel(x_ref, wih_ref, whh_ref, bias_ref, out_ref, buf_ref,
                       *, num_layers, seq_len, batch_pad, hidden, d_pad):
    """Fused multi-layer LSTM over the full sequence. grid=(1,).

    x_ref    : (L*Np, d_pad)              VMEM input (batch/feature zero-padded)
    wih_ref  : (layers, d_pad, 4H)        stacked, transposed, g-scaled W_ih
    whh_ref  : (layers, H, 4H)            stacked, transposed, g-scaled W_hh
    bias_ref : (layers, 1, 4H)            stacked, g-scaled (b_ih + b_hh)
    out_ref  : (L*Np, H)                  VMEM output (last layer's h per step)
    buf_ref  : (L*Np, d_pad)              VMEM scratch (inter-layer activations)
    """
    L, Np, H = seq_len, batch_pad, hidden

    for layer in range(num_layers):
        src = x_ref if layer == 0 else buf_ref
        dst = out_ref if layer == num_layers - 1 else buf_ref

        wih = wih_ref[layer]    # (d_pad, 4H)  static leading-dim load
        whh = whh_ref[layer]    # (H, 4H)
        b = bias_ref[layer]     # (1, 4H)

        # Hoisted input projection + fused bias for all timesteps at once:
        # (L*Np, d_pad) @ (d_pad, 4H) -> (L*Np, 4H)
        xp = jnp.dot(src[...], wih, preferred_element_type=jnp.float32) + b

        h = jnp.zeros((Np, H), jnp.float32)
        c = jnp.zeros((Np, H), jnp.float32)

        # Static unrolled recurrence; only h @ W_hh^T per step.
        for t in range(L):
            gates = xp[t * Np:(t + 1) * Np, :] + jnp.dot(
                h, whh, preferred_element_type=jnp.float32
            )  # (Np, 4H)

            # Single full-width sigmoid over the gates vreg. The g-gate columns
            # were pre-scaled by 2 at prep time, so tanh(z_g) = 2*sigmoid(2 z_g)-1
            # is recovered with VPU ops only.
            sig = jax.nn.sigmoid(gates)
            i_g = sig[:, 0 * H:1 * H]
            f_g = sig[:, 1 * H:2 * H]
            g_g = 2.0 * sig[:, 2 * H:3 * H] - 1.0
            o_g = sig[:, 3 * H:4 * H]

            c = f_g * c + i_g * g_g
            h = o_g * jnp.tanh(c)

            # 8-sublane-aligned store (t*Np is a multiple of 8).
            dst[t * Np:(t + 1) * Np, 0:H] = h

        # If the padded feature width exceeds H, zero the trailing columns of the
        # inter-layer buffer once so uninitialized VMEM can't reach the next layer.
        if dst is buf_ref and d_pad > H:
            dst[:, H:] = jnp.zeros((L * Np, d_pad - H), jnp.float32)


def prepare_block_lstm_params(params):
    """One-time param prep: transpose, fuse biases, fold g-gate tanh, pack & pad."""
    num_layers = len(params)
    H = params[0]["w_hh"].shape[1]
    d_in0 = params[0]["w_ih"].shape[1]
    d_pad = max(d_in0, H)

    # tanh(z) = 2*sigmoid(2z) - 1  ->  pre-scale the g-gate columns by 2.
    scale = jnp.concatenate(
        [jnp.ones((1, 2 * H), jnp.float32),
         jnp.full((1, H), 2.0, jnp.float32),
         jnp.ones((1, H), jnp.float32)], axis=1)

    wih_all, whh_all, bias_all = [], [], []
    for p in params:
        wih_t = jnp.asarray(p["w_ih"], jnp.float32).T * scale        # (d_in_l, 4H)
        whh_t = jnp.asarray(p["w_hh"], jnp.float32).T * scale        # (H, 4H)
        bias = (jnp.asarray(p["b_ih"] + p["b_hh"], jnp.float32)[None, :]
                * scale)                                             # (1, 4H)
        wih_t = jnp.pad(wih_t, ((0, d_pad - wih_t.shape[0]), (0, 0)))
        wih_all.append(wih_t)
        whh_all.append(whh_t)
        bias_all.append(bias)

    return dict(
        wih=jnp.stack(wih_all),      # (layers, d_pad, 4H)
        whh=jnp.stack(whh_all),      # (layers, H, 4H)
        bias=jnp.stack(bias_all),    # (layers, 1, 4H)
    )


@jax.jit
def block_lstm_forward(x, packed):
    """BlockLSTM.forward: stacked LSTM fused in one kernel; eval dropout = identity."""
    L, N, d_in0 = x.shape
    num_layers, d_pad, four_h = packed["wih"].shape
    H = four_h // 4
    Np = ((N + 7) // 8) * 8  # pad batch to the 8-sublane tile

    x_pad = jnp.pad(jnp.asarray(x, jnp.float32),
                    ((0, 0), (0, Np - N), (0, d_pad - d_in0)))
    x_flat = x_pad.reshape(L * Np, d_pad)

    kernel = functools.partial(
        _block_lstm_kernel,
        num_layers=num_layers, seq_len=L, batch_pad=Np, hidden=H, d_pad=d_pad)

    out_flat = pl.pallas_call(
        kernel,
        out_shape=jax.ShapeDtypeStruct((L * Np, H), jnp.float32),
        grid_spec=pltpu.PrefetchScalarGridSpec(
            num_scalar_prefetch=0,
            grid=(1,),
            in_specs=[
                pl.BlockSpec((L * Np, d_pad), lambda i: (0, 0)),
                pl.BlockSpec((num_layers, d_pad, four_h), lambda i: (0, 0, 0)),
                pl.BlockSpec((num_layers, H, four_h), lambda i: (0, 0, 0)),
                pl.BlockSpec((num_layers, 1, four_h), lambda i: (0, 0, 0)),
            ],
            out_specs=pl.BlockSpec((L * Np, H), lambda i: (0, 0)),
            scratch_shapes=[pltpu.VMEM((L * Np, d_pad), jnp.float32)],
        ),
        compiler_params=pltpu.CompilerParams(
            dimension_semantics=("arbitrary",),  # recurrence is sequential anyway
        ),
    )(x_flat, packed["wih"], packed["whh"], packed["bias"])

    # Dropout in eval mode == identity; drop the batch padding.
    return out_flat.reshape(L, Np, H)[:, :N, :]


def init_lstm_params(key, time_steps, num_layers, hidden):
    """Deterministic init mirroring PyTorch nn.LSTM param shapes and U(-k, k) init."""
    params = []
    k = 1.0 / jnp.sqrt(hidden)
    for layer in range(num_layers):
        d_in = time_steps if layer == 0 else hidden
        key, k1, k2, k3, k4 = jax.random.split(key, 5)
        params.append(dict(
            w_ih=jax.random.uniform(k1, (4 * hidden, d_in), jnp.float32, -k, k),
            w_hh=jax.random.uniform(k2, (4 * hidden, hidden), jnp.float32, -k, k),
            b_ih=jax.random.uniform(k3, (4 * hidden,), jnp.float32, -k, k),
            b_hh=jax.random.uniform(k4, (4 * hidden,), jnp.float32, -k, k),
        ))
    return params


# --- pure-JAX reference for correctness checking -----------------------------
def _ref_lstm_layer(x, w_ih, w_hh, b_ih, b_hh):
    L, N, _ = x.shape
    H = w_hh.shape[1]
    b = b_ih + b_hh

    def step(carry, x_t):
        h, c = carry
        gates = x_t @ w_ih.T + h @ w_hh.T + b
        i_g = jax.nn.sigmoid(gates[:, 0 * H:1 * H])
        f_g = jax.nn.sigmoid(gates[:, 1 * H:2 * H])
        g_g = jnp.tanh(gates[:, 2 * H:3 * H])
        o_g = jax.nn.sigmoid(gates[:, 3 * H:4 * H])
        c = f_g * c + i_g * g_g
        h = o_g * jnp.tanh(c)
        return (h, c), h

    init = (jnp.zeros((N, H), jnp.float32), jnp.zeros((N, H), jnp.float32))
    _, ys = jax.lax.scan(step, init, x)
    return ys


def _ref_forward(x, params):
    h = x
    for p in params:
        h = _ref_lstm_layer(h, p["w_ih"], p["w_hh"], p["b_ih"], p["b_hh"])
    return h


if __name__ == "__main__":
    # BlockLSTM(time_steps=16, num_variables=2, lstm_hs=32)
    time_steps = 16      # LSTM input_size
    num_variables = 2    # LSTM num_layers
    lstm_hs = 32         # hidden size
    seq_len = 8
    batch = 4

    key = jax.random.PRNGKey(0)
    key, xk = jax.random.split(key)
    x = jax.random.normal(xk, (seq_len, batch, time_steps), jnp.float32)

    params = init_lstm_params(key, time_steps, num_variables, lstm_hs)
    packed = prepare_block_lstm_params(params)   # one-time prep (hoisted from forward)

    y = block_lstm_forward(x, packed)
    y = jax.block_until_ready(y)

    y_ref = _ref_forward(x, params)
    assert y.shape == (seq_len, batch, lstm_hs)
    assert jnp.allclose(y, y_ref, atol=1e-4, rtol=1e-4), "mismatch vs reference"

    print("KERNEL_OK")
</pallas_src>

<mosaic_0001>
module attributes {stable_mosaic.version = 11 : i64} {
  func.func @_block_lstm_kernel(%arg0: i32, %arg1: memref<64x32xf32, #tpu.memory_space<vmem>>, %arg2: memref<2x32x128xf32, #tpu.memory_space<vmem>>, %arg3: memref<2x32x128xf32, #tpu.memory_space<vmem>>, %arg4: memref<2x1x128xf32, #tpu.memory_space<vmem>>, %arg5: memref<64x32xf32, #tpu.memory_space<vmem>>, %arg6: memref<64x32xf32, #tpu.memory_space<vmem>>) attributes {dimension_semantics = [#tpu.dimension_semantics<arbitrary>], iteration_bounds = array<i64: 1>, scalar_prefetch = 0 : i64, scratch_operands = 1 : i64, tpu.core_type = #tpu.core_type<tc>, window_params = [{pipeline_mode = #tpu.pipeline_mode<synchronous>, transform_indices = @transform_0, window_bounds = array<i64: 64, 32>}, {pipeline_mode = #tpu.pipeline_mode<synchronous>, transform_indices = @transform_1, window_bounds = array<i64: 2, 32, 128>}, {pipeline_mode = #tpu.pipeline_mode<synchronous>, transform_indices = @transform_2, window_bounds = array<i64: 2, 32, 128>}, {pipeline_mode = #tpu.pipeline_mode<synchronous>, transform_indices = @transform_3, window_bounds = array<i64: 2, 1, 128>}, {pipeline_mode = #tpu.pipeline_mode<synchronous>, transform_indices = @transform_4, window_bounds = array<i64: 64, 32>}]} {
    %c0 = arith.constant 0 : index
    %c0_0 = arith.constant 0 : index
    %c0_1 = arith.constant 0 : index
    %0 = vector.load %arg2[%c0, %c0_0, %c0_1] : memref<2x32x128xf32, #tpu.memory_space<vmem>>, vector<1x32x128xf32>
    %1 = vector.shape_cast %0 : vector<1x32x128xf32> to vector<32x128xf32>
    %c0_2 = arith.constant 0 : index
    %c0_3 = arith.constant 0 : index
    %c0_4 = arith.constant 0 : index
    %2 = vector.load %arg3[%c0_2, %c0_3, %c0_4] : memref<2x32x128xf32, #tpu.memory_space<vmem>>, vector<1x32x128xf32>
    %3 = vector.shape_cast %2 : vector<1x32x128xf32> to vector<32x128xf32>
    %c0_5 = arith.constant 0 : index
    %c0_6 = arith.constant 0 : index
    %c0_7 = arith.constant 0 : index
    %4 = vector.load %arg4[%c0_5, %c0_6, %c0_7] : memref<2x1x128xf32, #tpu.memory_space<vmem>>, vector<1x1x128xf32>
    %5 = vector.shape_cast %4 : vector<1x1x128xf32> to vector<1x128xf32>
    %c0_8 = arith.constant 0 : index
    %c0_9 = arith.constant 0 : index
    %6 = vector.load %arg1[%c0_8, %c0_9] : memref<64x32xf32, #tpu.memory_space<vmem>>, vector<64x32xf32>
    %cst = arith.constant dense<0.000000e+00> : vector<64x128xf32>
    %7 = tpu.matmul %6, %1, %cst {dimension_numbers = #tpu.dot_dimension_numbers<[1], [0], [0], [1], [0, 0, 1, 1], [], []>} : vector<64x32xf32>, vector<32x128xf32>, vector<64x128xf32> -> vector<64x128xf32>
    %8 = vector.broadcast %5 : vector<1x128xf32> to vector<64x128xf32>
    %9 = arith.addf %7, %8 : vector<64x128xf32>
    %cst_10 = arith.constant 0.000000e+00 : f32
    %10 = vector.broadcast %cst_10 : f32 to vector<8x32xf32>
    %cst_11 = arith.constant 0.000000e+00 : f32
    %11 = vector.broadcast %cst_11 : f32 to vector<8x32xf32>
    %12 = vector.extract_strided_slice %9 {offsets = [0, 0], sizes = [8, 128], strides = [1, 1]} : vector<64x128xf32> to vector<8x128xf32>
    %cst_12 = arith.constant dense<0.000000e+00> : vector<8x128xf32>
    %13 = tpu.matmul %10, %3, %cst_12 {dimension_numbers = #tpu.dot_dimension_numbers<[1], [0], [0], [1], [0, 0, 1, 1], [], []>} : vector<8x32xf32>, vector<32x128xf32>, vector<8x128xf32> -> vector<8x128xf32>
    %14 = arith.addf %12, %13 : vector<8x128xf32>
    %15 = arith.negf %14 : vector<8x128xf32>
    %16 = math.exp %15 : vector<8x128xf32>
    %cst_13 = arith.constant 1.000000e+00 : f32
    %17 = vector.broadcast %cst_13 : f32 to vector<8x128xf32>
    %18 = arith.addf %17, %16 : vector<8x128xf32>
    %19 = arith.divf %17, %18 : vector<8x128xf32>
    %20 = vector.extract_strided_slice %19 {offsets = [0, 0], sizes = [8, 32], strides = [1, 1]} : vector<8x128xf32> to vector<8x32xf32>
    %21 = vector.extract_strided_slice %19 {offsets = [0, 32], sizes = [8, 32], strides = [1, 1]} : vector<8x128xf32> to vector<8x32xf32>
    %22 = vector.extract_strided_slice %19 {offsets = [0, 64], sizes = [8, 32], strides = [1, 1]} : vector<8x128xf32> to vector<8x32xf32>
    %cst_14 = arith.constant 2.000000e+00 : f32
    %23 = vector.broadcast %cst_14 : f32 to vector<8x32xf32>
    %24 = arith.mulf %23, %22 : vector<8x32xf32>
    %cst_15 = arith.constant 1.000000e+00 : f32
    %25 = vector.broadcast %cst_15 : f32 to vector<8x32xf32>
    %26 = arith.subf %24, %25 : vector<8x32xf32>
    %27 = vector.extract_strided_slice %19 {offsets = [0, 96], sizes = [8, 32], strides = [1, 1]} : vector<8x128xf32> to vector<8x32xf32>
    %28 = arith.mulf %21, %11 : vector<8x32xf32>
    %29 = arith.mulf %20, %26 : vector<8x32xf32>
    %30 = arith.addf %28, %29 : vector<8x32xf32>
    %31 = math.tanh %30 : vector<8x32xf32>
    %32 = arith.mulf %27, %31 : vector<8x32xf32>
    %c0_16 = arith.constant 0 : index
    %c0_17 = arith.constant 0 : index
    %33 = vector.load %arg6[%c0_16, %c0_17] : memref<64x32xf32, #tpu.memory_space<vmem>>, vector<8x32xf32>
    tpu.vector_store %arg6[%c0_16, %c0_17], %32 {strides = array<i32>} : memref<64x32xf32, #tpu.memory_space<vmem>>, vector<8x32xf32>,
    %34 = vector.extract_strided_slice %9 {offsets = [8, 0], sizes = [8, 128], strides = [1, 1]} : vector<64x128xf32> to vector<8x128xf32>
    %cst_18 = arith.constant dense<0.000000e+00> : vector<8x128xf32>
    %35 = tpu.matmul %32, %3, %cst_18 {dimension_numbers = #tpu.dot_dimension_numbers<[1], [0], [0], [1], [0, 0, 1, 1], [], []>} : vector<8x32xf32>, vector<32x128xf32>, vector<8x128xf32> -> vector<8x128xf32>
    %36 = arith.addf %34, %35 : vector<8x128xf32>
    %37 = arith.negf %36 : vector<8x128xf32>
    %38 = math.exp %37 : vector<8x128xf32>
    %cst_19 = arith.constant 1.000000e+00 : f32
    %39 = vector.broadcast %cst_19 : f32 to vector<8x128xf32>
    %40 = arith.addf %39, %38 : vector<8x128xf32>
    %41 = arith.divf %39, %40 : vector<8x128xf32>
    %42 = vector.extract_strided_slice %41 {offsets = [0, 0], sizes = [8, 32], strides = [1, 1]} : vector<8x128xf32> to vector<8x32xf32>
    %43 = vector.extract_strided_slice %41 {offsets = [0, 32], sizes = [8, 32], strides = [1, 1]} : vector<8x128xf32> to vector<8x32xf32>
    %44 = vector.extract_strided_slice %41 {offsets = [0, 64], sizes = [8, 32], strides = [1, 1]} : vector<8x128xf32> to vector<8x32xf32>
    %cst_20 = arith.constant 2.000000e+00 : f32
    %45 = vector.broadcast %cst_20 : f32 to vector<8x32xf32>
    %46 = arith.mulf %45, %44 : vector<8x32xf32>
    %cst_21 = arith.constant 1.000000e+00 : f32
    %47 = vector.broadcast %cst_21 : f32 to vector<8x32xf32>
    %48 = arith.subf %46, %47 : vector<8x32xf32>
    %49 = vector.extract_strided_slice %41 {offsets = [0, 96], sizes = [8, 32], strides = [1, 1]} : vector<8x128xf32> to vector<8x32xf32>
    %50 = arith.mulf %43, %30 : vector<8x32xf32>
    %51 = arith.mulf %42, %48 : vector<8x32xf32>
    %52 = arith.addf %50, %51 : vector<8x32xf32>
    %53 = math.tanh %52 : vector<8x32xf32>
    %54 = arith.mulf %49, %53 : vector<8x32xf32>
    %c8 = arith.constant 8 : index
    %c0_22 = arith.constant 0 : index
    %55 = vector.load %arg6[%c8, %c0_22] : memref<64x32xf32, #tpu.memory_space<vmem>>, vector<8x32xf32>
    tpu.vector_store %arg6[%c8, %c0_22], %54 {strides = array<i32>} : memref<64x32xf32, #tpu.memory_space<vmem>>, vector<8x32xf32>,
    %56 = vector.extract_strided_slice %9 {offsets = [16, 0], sizes = [8, 128], strides = [1, 1]} : vector<64x128xf32> to vector<8x128xf32>
    %cst_23 = arith.constant dense<0.000000e+00> : vector<8x128xf32>
    %57 = tpu.matmul %54, %3, %cst_23 {dimension_numbers = #tpu.dot_dimension_numbers<[1], [0], [0], [1], [0, 0, 1, 1], [], []>} : vector<8x32xf32>, vector<32x128xf32>, vector<8x128xf32> -> vector<8x128xf32>
    %58 = arith.addf %56, %57 : vector<8x128xf32>
    %59 = arith.negf %58 : vector<8x128xf32>
    %60 = math.exp %59 : vector<8x128xf32>
    %cst_24 = arith.constant 1.000000e+00 : f32
    %61 = vector.broadcast %cst_24 : f32 to vector<8x128xf32>
    %62 = arith.addf %61, %60 : vector<8x128xf32>
    %63 = arith.divf %61, %62 : vector<8x128xf32>
    %64 = vector.extract_strided_slice %63 {offsets = [0, 0], sizes = [8, 32], strides = [1, 1]} : vector<8x128xf32> to vector<8x32xf32>
    %65 = vector.extract_strided_slice %63 {offsets = [0, 32], sizes = [8, 32], strides = [1, 1]} : vector<8x128xf32> to vector<8x32xf32>
    %66 = vector.extract_strided_slice %63 {offsets = [0, 64], sizes = [8, 32], strides = [1, 1]} : vector<8x128xf32> to vector<8x32xf32>
    %cst_25 = arith.constant 2.000000e+00 : f32
    %67 = vector.broadcast %cst_25 : f32 to vector<8x32xf32>
    %68 = arith.mulf %67, %66 : vector<8x32xf32>
    %cst_26 = arith.constant 1.000000e+00 : f32
    %69 = vector.broadcast %cst_26 : f32 to vector<8x32xf32>
    %70 = arith.subf %68, %69 : vector<8x32xf32>
    %71 = vector.extract_strided_slice %63 {offsets = [0, 96], sizes = [8, 32], strides = [1, 1]} : vector<8x128xf32> to vector<8x32xf32>
    %72 = arith.mulf %65, %52 : vector<8x32xf32>
    %73 = arith.mulf %64, %70 : vector<8x32xf32>
    %74 = arith.addf %72, %73 : vector<8x32xf32>
    %75 = math.tanh %74 : vector<8x32xf32>
    %76 = arith.mulf %71, %75 : vector<8x32xf32>
    %c16 = arith.constant 16 : index
    %c0_27 = arith.constant 0 : index
    %77 = vector.load %arg6[%c16, %c0_27] : memref<64x32xf32, #tpu.memory_space<vmem>>, vector<8x32xf32>
    tpu.vector_store %arg6[%c16, %c0_27], %76 {strides = array<i32>} : memref<64x32xf32, #tpu.memory_space<vmem>>, vector<8x32xf32>,
    %78 = vector.extract_strided_slice %9 {offsets = [24, 0], sizes = [8, 128], strides = [1, 1]} : vector<64x128xf32> to vector<8x128xf32>
    %cst_28 = arith.constant dense<0.000000e+00> : vector<8x128xf32>
    %79 = tpu.matmul %76, %3, %cst_28 {dimension_numbers = #tpu.dot_dimension_numbers<[1], [0], [0], [1], [0, 0, 1, 1], [], []>} : vector<8x32xf32>, vector<32x128xf32>, vector<8x128xf32> -> vector<8x128xf32>
    %80 = arith.addf %78, %79 : vector<8x128xf32>
    %81 = arith.negf %80 : vector<8x128xf32>
    %82 = math.exp %81 : vector<8x128xf32>
    %cst_29 = arith.constant 1.000000e+00 : f32
    %83 = vector.broadcast %cst_29 : f32 to vector<8x128xf32>
    %84 = arith.addf %83, %82 : vector<8x128xf32>
    %85 = arith.divf %83, %84 : vector<8x128xf32>
    %86 = vector.extract_strided_slice %85 {offsets = [0, 0], sizes = [8, 32], strides = [1, 1]} : vector<8x128xf32> to vector<8x32xf32>
    %87 = vector.extract_strided_slice %85 {offsets = [0, 32], sizes = [8, 32], strides = [1, 1]} : vector<8x128xf32> to vector<8x32xf32>
    %88 = vector.extract_strided_slice %85 {offsets = [0, 64], sizes = [8, 32], strides = [1, 1]} : vector<8x128xf32> to vector<8x32xf32>
    %cst_30 = arith.constant 2.000000e+00 : f32
    %89 = vector.broadcast %cst_30 : f32 to vector<8x32xf32>
    %90 = arith.mulf %89, %88 : vector<8x32xf32>
    %cst_31 = arith.constant 1.000000e+00 : f32
    %91 = vector.broadcast %cst_31 : f32 to vector<8x32xf32>
    %92 = arith.subf %90, %91 : vector<8x32xf32>
    %93 = vector.extract_strided_slice %85 {offsets = [0, 96], sizes = [8, 32], strides = [1, 1]} : vector<8x128xf32> to vector<8x32xf32>
    %94 = arith.mulf %87, %74 : vector<8x32xf32>
    %95 = arith.mulf %86, %92 : vector<8x32xf32>
    %96 = arith.addf %94, %95 : vector<8x32xf32>
    %97 = math.tanh %96 : vector<8x32xf32>
    %98 = arith.mulf %93, %97 : vector<8x32xf32>
    %c24 = arith.constant 24 : index
    %c0_32 = arith.constant 0 : index
    %99 = vector.load %arg6[%c24, %c0_32] : memref<64x32xf32, #tpu.memory_space<vmem>>, vector<8x32xf32>
    tpu.vector_store %arg6[%c24, %c0_32], %98 {strides = array<i32>} : memref<64x32xf32, #tpu.memory_space<vmem>>, vector<8x32xf32>,
    %100 = vector.extract_strided_slice %9 {offsets = [32, 0], sizes = [8, 128], strides = [1, 1]} : vector<64x128xf32> to vector<8x128xf32>
    %cst_33 = arith.constant dense<0.000000e+00> : vector<8x128xf32>
    %101 = tpu.matmul %98, %3, %cst_33 {dimension_numbers = #tpu.dot_dimension_numbers<[1], [0], [0], [1], [0, 0, 1, 1], [], []>} : vector<8x32xf32>, vector<32x128xf32>, vector<8x128xf32> -> vector<8x128xf32>
    %102 = arith.addf %100, %101 : vector<8x128xf32>
    %103 = arith.negf %102 : vector<8x128xf32>
    %104 = math.exp %103 : vector<8x128xf32>
    %cst_34 = arith.constant 1.000000e+00 : f32
    %105 = vector.broadcast %cst_34 : f32 to vector<8x128xf32>
    %106 = arith.addf %105, %104 : vector<8x128xf32>
    %107 = arith.divf %105, %106 : vector<8x128xf32>
    %108 = vector.extract_strided_slice %107 {offsets = [0, 0], sizes = [8, 32], strides = [1, 1]} : vector<8x128xf32> to vector<8x32xf32>
    %109 = vector.extract_strided_slice %107 {offsets = [0, 32], sizes = [8, 32], strides = [1, 1]} : vector<8x128xf32> to vector<8x32xf32>
    %110 = vector.extract_strided_slice %107 {offsets = [0, 64], sizes = [8, 32], strides = [1, 1]} : vector<8x128xf32> to vector<8x32xf32>
    %cst_35 = arith.constant 2.000000e+00 : f32
    %111 = vector.broadcast %cst_35 : f32 to vector<8x32xf32>
    %112 = arith.mulf %111, %110 : vector<8x32xf32>
    %cst_36 = arith.constant 1.000000e+00 : f32
    %113 = vector.broadcast %cst_36 : f32 to vector<8x32xf32>
    %114 = arith.subf %112, %113 : vector<8x32xf32>
    %115 = vector.extract_strided_slice %107 {offsets = [0, 96], sizes = [8, 32], strides = [1, 1]} : vector<8x128xf32> to vector<8x32xf32>
    %116 = arith.mulf %109, %96 : vector<8x32xf32>
    %117 = arith.mulf %108, %114 : vector<8x32xf32>
    %118 = arith.addf %116, %117 : vector<8x32xf32>
    %119 = math.tanh %118 : vector<8x32xf32>
    %120 = arith.mulf %115, %119 : vector<8x32xf32>
    %c32 = arith.constant 32 : index
    %c0_37 = arith.constant 0 : index
    %121 = vector.load %arg6[%c32, %c0_37] : memref<64x32xf32, #tpu.memory_space<vmem>>, vector<8x32xf32>
    tpu.vector_store %arg6[%c32, %c0_37], %120 {strides = array<i32>} : memref<64x32xf32, #tpu.memory_space<vmem>>, vector<8x32xf32>,
    %122 = vector.extract_strided_slice %9 {offsets = [40, 0], sizes = [8, 128], strides = [1, 1]} : vector<64x128xf32> to vector<8x128xf32>
    %cst_38 = arith.constant dense<0.000000e+00> : vector<8x128xf32>
    %123 = tpu.matmul %120, %3, %cst_38 {dimension_numbers = #tpu.dot_dimension_numbers<[1], [0], [0], [1], [0, 0, 1, 1], [], []>} : vector<8x32xf32>, vector<32x128xf32>, vector<8x128xf32> -> vector<8x128xf32>
    %124 = arith.addf %122, %123 : vector<8x128xf32>
    %125 = arith.negf %124 : vector<8x128xf32>
    %126 = math.exp %125 : vector<8x128xf32>
    %cst_39 = arith.constant 1.000000e+00 : f32
    %127 = vector.broadcast %cst_39 : f32 to vector<8x128xf32>
    %128 = arith.addf %127, %126 : vector<8x128xf32>
    %129 = arith.divf %127, %128 : vector<8x128xf32>
    %130 = vector.extract_strided_slice %129 {offsets = [0, 0], sizes = [8, 32], strides = [1, 1]} : vector<8x128xf32> to vector<8x32xf32>
    %131 = vector.extract_strided_slice %129 {offsets = [0, 32], sizes = [8, 32], strides = [1, 1]} : vector<8x128xf32> to vector<8x32xf32>
    %132 = vector.extract_strided_slice %129 {offsets = [0, 64], sizes = [8, 32], strides = [1, 1]} : vector<8x128xf32> to vector<8x32xf32>
    %cst_40 = arith.constant 2.000000e+00 : f32
    %133 = vector.broadcast %cst_40 : f32 to vector<8x32xf32>
    %134 = arith.mulf %133, %132 : vector<8x32xf32>
    %cst_41 = arith.constant 1.000000e+00 : f32
    %135 = vector.broadcast %cst_41 : f32 to vector<8x32xf32>
    %136 = arith.subf %134, %135 : vector<8x32xf32>
    %137 = vector.extract_strided_slice %129 {offsets = [0, 96], sizes = [8, 32], strides = [1, 1]} : vector<8x128xf32> to vector<8x32xf32>
    %138 = arith.mulf %131, %118 : vector<8x32xf32>
    %139 = arith.mulf %130, %136 : vector<8x32xf32>
    %140 = arith.addf %138, %139 : vector<8x32xf32>
    %141 = math.tanh %140 : vector<8x32xf32>
    %142 = arith.mulf %137, %141 : vector<8x32xf32>
    %c40 = arith.constant 40 : index
    %c0_42 = arith.constant 0 : index
    %143 = vector.load %arg6[%c40, %c0_42] : memref<64x32xf32, #tpu.memory_space<vmem>>, vector<8x32xf32>
    tpu.vector_store %arg6[%c40, %c0_42], %142 {strides = array<i32>} : memref<64x32xf32, #tpu.memory_space<vmem>>, vector<8x32xf32>,
    %144 = vector.extract_strided_slice %9 {offsets = [48, 0], sizes = [8, 128], strides = [1, 1]} : vector<64x128xf32> to vector<8x128xf32>
    %cst_43 = arith.constant dense<0.000000e+00> : vector<8x128xf32>
    %145 = tpu.matmul %142, %3, %cst_43 {dimension_numbers = #tpu.dot_dimension_numbers<[1], [0], [0], [1], [0, 0, 1, 1], [], []>} : vector<8x32xf32>, vector<32x128xf32>, vector<8x128xf32> -> vector<8x128xf32>
    %146 = arith.addf %144, %145 : vector<8x128xf32>
    %147 = arith.negf %146 : vector<8x128xf32>
    %148 = math.exp %147 : vector<8x128xf32>
    %cst_44 = arith.constant 1.000000e+00 : f32
    %149 = vector.broadcast %cst_44 : f32 to vector<8x128xf32>
    %150 = arith.addf %149, %148 : vector<8x128xf32>
    %151 = arith.divf %149, %150 : vector<8x128xf32>
    %152 = vector.extract_strided_slice %151 {offsets = [0, 0], sizes = [8, 32], strides = [1, 1]} : vector<8x128xf32> to vector<8x32xf32>
    %153 = vector.extract_strided_slice %151 {offsets = [0, 32], sizes = [8, 32], strides = [1, 1]} : vector<8x128xf32> to vector<8x32xf32>
    %154 = vector.extract_strided_slice %151 {offsets = [0, 64], sizes = [8, 32], strides = [1, 1]} : vector<8x128xf32> to vector<8x32xf32>
    %cst_45 = arith.constant 2.000000e+00 : f32
    %155 = vector.broadcast %cst_45 : f32 to vector<8x32xf32>
    %156 = arith.mulf %155, %154 : vector<8x32xf32>
    %cst_46 = arith.constant 1.000000e+00 : f32
    %157 = vector.broadcast %cst_46 : f32 to vector<8x32xf32>
    %158 = arith.subf %156, %157 : vector<8x32xf32>
    %159 = vector.extract_strided_slice %151 {offsets = [0, 96], sizes = [8, 32], strides = [1, 1]} : vector<8x128xf32> to vector<8x32xf32>
    %160 = arith.mulf %153, %140 : vector<8x32xf32>
    %161 = arith.mulf %152, %158 : vector<8x32xf32>
    %162 = arith.addf %160, %161 : vector<8x32xf32>
    %163 = math.tanh %162 : vector<8x32xf32>
    %164 = arith.mulf %159, %163 : vector<8x32xf32>
    %c48 = arith.constant 48 : index
    %c0_47 = arith.constant 0 : index
    %165 = vector.load %arg6[%c48, %c0_47] : memref<64x32xf32, #tpu.memory_space<vmem>>, vector<8x32xf32>
    tpu.vector_store %arg6[%c48, %c0_47], %164 {strides = array<i32>} : memref<64x32xf32, #tpu.memory_space<vmem>>, vector<8x32xf32>,
    %166 = vector.extract_strided_slice %9 {offsets = [56, 0], sizes = [8, 128], strides = [1, 1]} : vector<64x128xf32> to vector<8x128xf32>
    %cst_48 = arith.constant dense<0.000000e+00> : vector<8x128xf32>
    %167 = tpu.matmul %164, %3, %cst_48 {dimension_numbers = #tpu.dot_dimension_numbers<[1], [0], [0], [1], [0, 0, 1, 1], [], []>} : vector<8x32xf32>, vector<32x128xf32>, vector<8x128xf32> -> vector<8x128xf32>
    %168 = arith.addf %166, %167 : vector<8x128xf32>
    %169 = arith.negf %168 : vector<8x128xf32>
    %170 = math.exp %169 : vector<8x128xf32>
    %cst_49 = arith.constant 1.000000e+00 : f32
    %171 = vector.broadcast %cst_49 : f32 to vector<8x128xf32>
    %172 = arith.addf %171, %170 : vector<8x128xf32>
    %173 = arith.divf %171, %172 : vector<8x128xf32>
    %174 = vector.extract_strided_slice %173 {offsets = [0, 0], sizes = [8, 32], strides = [1, 1]} : vector<8x128xf32> to vector<8x32xf32>
    %175 = vector.extract_strided_slice %173 {offsets = [0, 32], sizes = [8, 32], strides = [1, 1]} : vector<8x128xf32> to vector<8x32xf32>
    %176 = vector.extract_strided_slice %173 {offsets = [0, 64], sizes = [8, 32], strides = [1, 1]} : vector<8x128xf32> to vector<8x32xf32>
    %cst_50 = arith.constant 2.000000e+00 : f32
    %177 = vector.broadcast %cst_50 : f32 to vector<8x32xf32>
    %178 = arith.mulf %177, %176 : vector<8x32xf32>
    %cst_51 = arith.constant 1.000000e+00 : f32
    %179 = vector.broadcast %cst_51 : f32 to vector<8x32xf32>
    %180 = arith.subf %178, %179 : vector<8x32xf32>
    %181 = vector.extract_strided_slice %173 {offsets = [0, 96], sizes = [8, 32], strides = [1, 1]} : vector<8x128xf32> to vector<8x32xf32>
    %182 = arith.mulf %175, %162 : vector<8x32xf32>
    %183 = arith.mulf %174, %180 : vector<8x32xf32>
    %184 = arith.addf %182, %183 : vector<8x32xf32>
    %185 = math.tanh %184 : vector<8x32xf32>
    %186 = arith.mulf %181, %185 : vector<8x32xf32>
    %c56 = arith.constant 56 : index
    %c0_52 = arith.constant 0 : index
    %187 = vector.load %arg6[%c56, %c0_52] : memref<64x32xf32, #tpu.memory_space<vmem>>, vector<8x32xf32>
    tpu.vector_store %arg6[%c56, %c0_52], %186 {strides = array<i32>} : memref<64x32xf32, #tpu.memory_space<vmem>>, vector<8x32xf32>,
    %c1 = arith.constant 1 : index
    %c0_53 = arith.constant 0 : index
    %c0_54 = arith.constant 0 : index
    %188 = vector.load %arg2[%c1, %c0_53, %c0_54] : memref<2x32x128xf32, #tpu.memory_space<vmem>>, vector<1x32x128xf32>
    %189 = vector.shape_cast %188 : vector<1x32x128xf32> to vector<32x128xf32>
    %c1_55 = arith.constant 1 : index
    %c0_56 = arith.constant 0 : index
    %c0_57 = arith.constant 0 : index
    %190 = vector.load %arg3[%c1_55, %c0_56, %c0_57] : memref<2x32x128xf32, #tpu.memory_space<vmem>>, vector<1x32x128xf32>
    %191 = vector.shape_cast %190 : vector<1x32x128xf32> to vector<32x128xf32>
    %c1_58 = arith.constant 1 : index
    %c0_59 = arith.constant 0 : index
    %c0_60 = arith.constant 0 : index
    %192 = vector.load %arg4[%c1_58, %c0_59, %c0_60] : memref<2x1x128xf32, #tpu.memory_space<vmem>>, vector<1x1x128xf32>
    %193 = vector.shape_cast %192 : vector<1x1x128xf32> to vector<1x128xf32>
    %c0_61 = arith.constant 0 : index
    %c0_62 = arith.constant 0 : index
    %194 = vector.load %arg6[%c0_61, %c0_62] : memref<64x32xf32, #tpu.memory_space<vmem>>, vector<64x32xf32>
    %cst_63 = arith.constant dense<0.000000e+00> : vector<64x128xf32>
    %195 = tpu.matmul %194, %189, %cst_63 {dimension_numbers = #tpu.dot_dimension_numbers<[1], [0], [0], [1], [0, 0, 1, 1], [], []>} : vector<64x32xf32>, vector<32x128xf32>, vector<64x128xf32> -> vector<64x128xf32>
    %196 = vector.broadcast %193 : vector<1x128xf32> to vector<64x128xf32>
    %197 = arith.addf %195, %196 : vector<64x128xf32>
    %cst_64 = arith.constant 0.000000e+00 : f32
    %198 = vector.broadcast %cst_64 : f32 to vector<8x32xf32>
    %cst_65 = arith.constant 0.000000e+00 : f32
    %199 = vector.broadcast %cst_65 : f32 to vector<8x32xf32>
    %200 = vector.extract_strided_slice %197 {offsets = [0, 0], sizes = [8, 128], strides = [1, 1]} : vector<64x128xf32> to vector<8x128xf32>
    %cst_66 = arith.constant dense<0.000000e+00> : vector<8x128xf32>
    %201 = tpu.matmul %198, %191, %cst_66 {dimension_numbers = #tpu.dot_dimension_numbers<[1], [0], [0], [1], [0, 0, 1, 1], [], []>} : vector<8x32xf32>, vector<32x128xf32>, vector<8x128xf32> -> vector<8x128xf32>
    %202 = arith.addf %200, %201 : vector<8x128xf32>
    %203 = arith.negf %202 : vector<8x128xf32>
    %204 = math.exp %203 : vector<8x128xf32>
    %cst_67 = arith.constant 1.000000e+00 : f32
    %205 = vector.broadcast %cst_67 : f32 to vector<8x128xf32>
    %206 = arith.addf %205, %204 : vector<8x128xf32>
    %207 = arith.divf %205, %206 : vector<8x128xf32>
    %208 = vector.extract_strided_slice %207 {offsets = [0, 0], sizes = [8, 32], strides = [1, 1]} : vector<8x128xf32> to vector<8x32xf32>
    %209 = vector.extract_strided_slice %207 {offsets = [0, 32], sizes = [8, 32], strides = [1, 1]} : vector<8x128xf32> to vector<8x32xf32>
    %210 = vector.extract_strided_slice %207 {offsets = [0, 64], sizes = [8, 32], strides = [1, 1]} : vector<8x128xf32> to vector<8x32xf32>
    %cst_68 = arith.constant 2.000000e+00 : f32
    %211 = vector.broadcast %cst_68 : f32 to vector<8x32xf32>
    %212 = arith.mulf %211, %210 : vector<8x32xf32>
    %cst_69 = arith.constant 1.000000e+00 : f32
    %213 = vector.broadcast %cst_69 : f32 to vector<8x32xf32>
    %214 = arith.subf %212, %213 : vector<8x32xf32>
    %215 = vector.extract_strided_slice %207 {offsets = [0, 96], sizes = [8, 32], strides = [1, 1]} : vector<8x128xf32> to vector<8x32xf32>
    %216 = arith.mulf %209, %199 : vector<8x32xf32>
    %217 = arith.mulf %208, %214 : vector<8x32xf32>
    %218 = arith.addf %216, %217 : vector<8x32xf32>
    %219 = math.tanh %218 : vector<8x32xf32>
    %220 = arith.mulf %215, %219 : vector<8x32xf32>
    %c0_70 = arith.constant 0 : index
    %c0_71 = arith.constant 0 : index
    %221 = vector.load %arg5[%c0_70, %c0_71] : memref<64x32xf32, #tpu.memory_space<vmem>>, vector<8x32xf32>
    tpu.vector_store %arg5[%c0_70, %c0_71], %220 {strides = array<i32>} : memref<64x32xf32, #tpu.memory_space<vmem>>, vector<8x32xf32>,
    %222 = vector.extract_strided_slice %197 {offsets = [8, 0], sizes = [8, 128], strides = [1, 1]} : vector<64x128xf32> to vector<8x128xf32>
    %cst_72 = arith.constant dense<0.000000e+00> : vector<8x128xf32>
    %223 = tpu.matmul %220, %191, %cst_72 {dimension_numbers = #tpu.dot_dimension_numbers<[1], [0], [0], [1], [0, 0, 1, 1], [], []>} : vector<8x32xf32>, vector<32x128xf32>, vector<8x128xf32> -> vector<8x128xf32>
    %224 = arith.addf %222, %223 : vector<8x128xf32>
    %225 = arith.negf %224 : vector<8x128xf32>
    %226 = math.exp %225 : vector<8x128xf32>
    %cst_73 = arith.constant 1.000000e+00 : f32
    %227 = vector.broadcast %cst_73 : f32 to vector<8x128xf32>
    %228 = arith.addf %227, %226 : vector<8x128xf32>
    %229 = arith.divf %227, %228 : vector<8x128xf32>
    %230 = vector.extract_strided_slice %229 {offsets = [0, 0], sizes = [8, 32], strides = [1, 1]} : vector<8x128xf32> to vector<8x32xf32>
    %231 = vector.extract_strided_slice %229 {offsets = [0, 32], sizes = [8, 32], strides = [1, 1]} : vector<8x128xf32> to vector<8x32xf32>
    %232 = vector.extract_strided_slice %229 {offsets = [0, 64], sizes = [8, 32], strides = [1, 1]} : vector<8x128xf32> to vector<8x32xf32>
    %cst_74 = arith.constant 2.000000e+00 : f32
    %233 = vector.broadcast %cst_74 : f32 to vector<8x32xf32>
    %234 = arith.mulf %233, %232 : vector<8x32xf32>
    %cst_75 = arith.constant 1.000000e+00 : f32
    %235 = vector.broadcast %cst_75 : f32 to vector<8x32xf32>
    %236 = arith.subf %234, %235 : vector<8x32xf32>
    %237 = vector.extract_strided_slice %229 {offsets = [0, 96], sizes = [8, 32], strides = [1, 1]} : vector<8x128xf32> to vector<8x32xf32>
    %238 = arith.mulf %231, %218 : vector<8x32xf32>
    %239 = arith.mulf %230, %236 : vector<8x32xf32>
    %240 = arith.addf %238, %239 : vector<8x32xf32>
    %241 = math.tanh %240 : vector<8x32xf32>
    %242 = arith.mulf %237, %241 : vector<8x32xf32>
    %c8_76 = arith.constant 8 : index
    %c0_77 = arith.constant 0 : index
    %243 = vector.load %arg5[%c8_76, %c0_77] : memref<64x32xf32, #tpu.memory_space<vmem>>, vector<8x32xf32>
    tpu.vector_store %arg5[%c8_76, %c0_77], %242 {strides = array<i32>} : memref<64x32xf32, #tpu.memory_space<vmem>>, vector<8x32xf32>,
    %244 = vector.extract_strided_slice %197 {offsets = [16, 0], sizes = [8, 128], strides = [1, 1]} : vector<64x128xf32> to vector<8x128xf32>
    %cst_78 = arith.constant dense<0.000000e+00> : vector<8x128xf32>
    %245 = tpu.matmul %242, %191, %cst_78 {dimension_numbers = #tpu.dot_dimension_numbers<[1], [0], [0], [1], [0, 0, 1, 1], [], []>} : vector<8x32xf32>, vector<32x128xf32>, vector<8x128xf32> -> vector<8x128xf32>
    %246 = arith.addf %244, %245 : vector<8x128xf32>
    %247 = arith.negf %246 : vector<8x128xf32>
    %248 = math.exp %247 : vector<8x128xf32>
    %cst_79 = arith.constant 1.000000e+00 : f32
    %249 = vector.broadcast %cst_79 : f32 to vector<8x128xf32>
    %250 = arith.addf %249, %248 : vector<8x128xf32>
    %251 = arith.divf %249, %250 : vector<8x128xf32>
    %252 = vector.extract_strided_slice %251 {offsets = [0, 0], sizes = [8, 32], strides = [1, 1]} : vector<8x128xf32> to vector<8x32xf32>
    %253 = vector.extract_strided_slice %251 {offsets = [0, 32], sizes = [8, 32], strides = [1, 1]} : vector<8x128xf32> to vector<8x32xf32>
    %254 = vector.extract_strided_slice %251 {offsets = [0, 64], sizes = [8, 32], strides = [1, 1]} : vector<8x128xf32> to vector<8x32xf32>
    %cst_80 = arith.constant 2.000000e+00 : f32
    %255 = vector.broadcast %cst_80 : f32 to vector<8x32xf32>
    %256 = arith.mulf %255, %254 : vector<8x32xf32>
    %cst_81 = arith.constant 1.000000e+00 : f32
    %257 = vector.broadcast %cst_81 : f32 to vector<8x32xf32>
    %258 = arith.subf %256, %257 : vector<8x32xf32>
    %259 = vector.extract_strided_slice %251 {offsets = [0, 96], sizes = [8, 32], strides = [1, 1]} : vector<8x128xf32> to vector<8x32xf32>
    %260 = arith.mulf %253, %240 : vector<8x32xf32>
    %261 = arith.mulf %252, %258 : vector<8x32xf32>
    %262 = arith.addf %260, %261 : vector<8x32xf32>
    %263 = math.tanh %262 : vector<8x32xf32>
    %264 = arith.mulf %259, %263 : vector<8x32xf32>
    %c16_82 = arith.constant 16 : index
    %c0_83 = arith.constant 0 : index
    %265 = vector.load %arg5[%c16_82, %c0_83] : memref<64x32xf32, #tpu.memory_space<vmem>>, vector<8x32xf32>
    tpu.vector_store %arg5[%c16_82, %c0_83], %264 {strides = array<i32>} : memref<64x32xf32, #tpu.memory_space<vmem>>, vector<8x32xf32>,
    %266 = vector.extract_strided_slice %197 {offsets = [24, 0], sizes = [8, 128], strides = [1, 1]} : vector<64x128xf32> to vector<8x128xf32>
    %cst_84 = arith.constant dense<0.000000e+00> : vector<8x128xf32>
    %267 = tpu.matmul %264, %191, %cst_84 {dimension_numbers = #tpu.dot_dimension_numbers<[1], [0], [0], [1], [0, 0, 1, 1], [], []>} : vector<8x32xf32>, vector<32x128xf32>, vector<8x128xf32> -> vector<8x128xf32>
    %268 = arith.addf %266, %267 : vector<8x128xf32>
    %269 = arith.negf %268 : vector<8x128xf32>
    %270 = math.exp %269 : vector<8x128xf32>
    %cst_85 = arith.constant 1.000000e+00 : f32
    %271 = vector.broadcast %cst_85 : f32 to vector<8x128xf32>
    %272 = arith.addf %271, %270 : vector<8x128xf32>
    %273 = arith.divf %271, %272 : vector<8x128xf32>
    %274 = vector.extract_strided_slice %273 {offsets = [0, 0], sizes = [8, 32], strides = [1, 1]} : vector<8x128xf32> to vector<8x32xf32>
    %275 = vector.extract_strided_slice %273 {offsets = [0, 32], sizes = [8, 32], strides = [1, 1]} : vector<8x128xf32> to vector<8x32xf32>
    %276 = vector.extract_strided_slice %273 {offsets = [0, 64], sizes = [8, 32], strides = [1, 1]} : vector<8x128xf32> to vector<8x32xf32>
    %cst_86 = arith.constant 2.000000e+00 : f32
    %277 = vector.broadcast %cst_86 : f32 to vector<8x32xf32>
    %278 = arith.mulf %277, %276 : vector<8x32xf32>
    %cst_87 = arith.constant 1.000000e+00 : f32
    %279 = vector.broadcast %cst_87 : f32 to vector<8x32xf32>
    %280 = arith.subf %278, %279 : vector<8x32xf32>
    %281 = vector.extract_strided_slice %273 {offsets = [0, 96], sizes = [8, 32], strides = [1, 1]} : vector<8x128xf32> to vector<8x32xf32>
    %282 = arith.mulf %275, %262 : vector<8x32xf32>
    %283 = arith.mulf %274, %280 : vector<8x32xf32>
    %284 = arith.addf %282, %283 : vector<8x32xf32>
    %285 = math.tanh %284 : vector<8x32xf32>
    %286 = arith.mulf %281, %285 : vector<8x32xf32>
    %c24_88 = arith.constant 24 : index
    %c0_89 = arith.constant 0 : index
    %287 = vector.load %arg5[%c24_88, %c0_89] : memref<64x32xf32, #tpu.memory_space<vmem>>, vector<8x32xf32>
    tpu.vector_store %arg5[%c24_88, %c0_89], %286 {strides = array<i32>} : memref<64x32xf32, #tpu.memory_space<vmem>>, vector<8x32xf32>,
    %288 = vector.extract_strided_slice %197 {offsets = [32, 0], sizes = [8, 128], strides = [1, 1]} : vector<64x128xf32> to vector<8x128xf32>
    %cst_90 = arith.constant dense<0.000000e+00> : vector<8x128xf32>
    %289 = tpu.matmul %286, %191, %cst_90 {dimension_numbers = #tpu.dot_dimension_numbers<[1], [0], [0], [1], [0, 0, 1, 1], [], []>} : vector<8x32xf32>, vector<32x128xf32>, vector<8x128xf32> -> vector<8x128xf32>
    %290 = arith.addf %288, %289 : vector<8x128xf32>
    %291 = arith.negf %290 : vector<8x128xf32>
    %292 = math.exp %291 : vector<8x128xf32>
    %cst_91 = arith.constant 1.000000e+00 : f32
    %293 = vector.broadcast %cst_91 : f32 to vector<8x128xf32>
    %294 = arith.addf %293, %292 : vector<8x128xf32>
    %295 = arith.divf %293, %294 : vector<8x128xf32>
    %296 = vector.extract_strided_slice %295 {offsets = [0, 0], sizes = [8, 32], strides = [1, 1]} : vector<8x128xf32> to vector<8x32xf32>
    %297 = vector.extract_strided_slice %295 {offsets = [0, 32], sizes = [8, 32], strides = [1, 1]} : vector<8x128xf32> to vector<8x32xf32>
    %298 = vector.extract_strided_slice %295 {offsets = [0, 64], sizes = [8, 32], strides = [1, 1]} : vector<8x128xf32> to vector<8x32xf32>
    %cst_92 = arith.constant 2.000000e+00 : f32
    %299 = vector.broadcast %cst_92 : f32 to vector<8x32xf32>
    %300 = arith.mulf %299, %298 : vector<8x32xf32>
    %cst_93 = arith.constant 1.000000e+00 : f32
    %301 = vector.broadcast %cst_93 : f32 to vector<8x32xf32>
    %302 = arith.subf %300, %301 : vector<8x32xf32>
    %303 = vector.extract_strided_slice %295 {offsets = [0, 96], sizes = [8, 32], strides = [1, 1]} : vector<8x128xf32> to vector<8x32xf32>
    %304 = arith.mulf %297, %284 : vector<8x32xf32>
    %305 = arith.mulf %296, %302 : vector<8x32xf32>
    %306 = arith.addf %304, %305 : vector<8x32xf32>
    %307 = math.tanh %306 : vector<8x32xf32>
    %308 = arith.mulf %303, %307 : vector<8x32xf32>
    %c32_94 = arith.constant 32 : index
    %c0_95 = arith.constant 0 : index
    %309 = vector.load %arg5[%c32_94, %c0_95] : memref<64x32xf32, #tpu.memory_space<vmem>>, vector<8x32xf32>
    tpu.vector_store %arg5[%c32_94, %c0_95], %308 {strides = array<i32>} : memref<64x32xf32, #tpu.memory_space<vmem>>, vector<8x32xf32>,
    %310 = vector.extract_strided_slice %197 {offsets = [40, 0], sizes = [8, 128], strides = [1, 1]} : vector<64x128xf32> to vector<8x128xf32>
    %cst_96 = arith.constant dense<0.000000e+00> : vector<8x128xf32>
    %311 = tpu.matmul %308, %191, %cst_96 {dimension_numbers = #tpu.dot_dimension_numbers<[1], [0], [0], [1], [0, 0, 1, 1], [], []>} : vector<8x32xf32>, vector<32x128xf32>, vector<8x128xf32> -> vector<8x128xf32>
    %312 = arith.addf %310, %311 : vector<8x128xf32>
    %313 = arith.negf %312 : vector<8x128xf32>
    %314 = math.exp %313 : vector<8x128xf32>
    %cst_97 = arith.constant 1.000000e+00 : f32
    %315 = vector.broadcast %cst_97 : f32 to vector<8x128xf32>
    %316 = arith.addf %315, %314 : vector<8x128xf32>
    %317 = arith.divf %315, %316 : vector<8x128xf32>
    %318 = vector.extract_strided_slice %317 {offsets = [0, 0], sizes = [8, 32], strides = [1, 1]} : vector<8x128xf32> to vector<8x32xf32>
    %319 = vector.extract_strided_slice %317 {offsets = [0, 32], sizes = [8, 32], strides = [1, 1]} : vector<8x128xf32> to vector<8x32xf32>
    %320 = vector.extract_strided_slice %317 {offsets = [0, 64], sizes = [8, 32], strides = [1, 1]} : vector<8x128xf32> to vector<8x32xf32>
    %cst_98 = arith.constant 2.000000e+00 : f32
    %321 = vector.broadcast %cst_98 : f32 to vector<8x32xf32>
    %322 = arith.mulf %321, %320 : vector<8x32xf32>
    %cst_99 = arith.constant 1.000000e+00 : f32
    %323 = vector.broadcast %cst_99 : f32 to vector<8x32xf32>
    %324 = arith.subf %322, %323 : vector<8x32xf32>
    %325 = vector.extract_strided_slice %317 {offsets = [0, 96], sizes = [8, 32], strides = [1, 1]} : vector<8x128xf32> to vector<8x32xf32>
    %326 = arith.mulf %319, %306 : vector<8x32xf32>
    %327 = arith.mulf %318, %324 : vector<8x32xf32>
    %328 = arith.addf %326, %327 : vector<8x32xf32>
    %329 = math.tanh %328 : vector<8x32xf32>
    %330 = arith.mulf %325, %329 : vector<8x32xf32>
    %c40_100 = arith.constant 40 : index
    %c0_101 = arith.constant 0 : index
    %331 = vector.load %arg5[%c40_100, %c0_101] : memref<64x32xf32, #tpu.memory_space<vmem>>, vector<8x32xf32>
    tpu.vector_store %arg5[%c40_100, %c0_101], %330 {strides = array<i32>} : memref<64x32xf32, #tpu.memory_space<vmem>>, vector<8x32xf32>,
    %332 = vector.extract_strided_slice %197 {offsets = [48, 0], sizes = [8, 128], strides = [1, 1]} : vector<64x128xf32> to vector<8x128xf32>
    %cst_102 = arith.constant dense<0.000000e+00> : vector<8x128xf32>
    %333 = tpu.matmul %330, %191, %cst_102 {dimension_numbers = #tpu.dot_dimension_numbers<[1], [0], [0], [1], [0, 0, 1, 1], [], []>} : vector<8x32xf32>, vector<32x128xf32>, vector<8x128xf32> -> vector<8x128xf32>
    %334 = arith.addf %332, %333 : vector<8x128xf32>
    %335 = arith.negf %334 : vector<8x128xf32>
    %336 = math.exp %335 : vector<8x128xf32>
    %cst_103 = arith.constant 1.000000e+00 : f32
    %337 = vector.broadcast %cst_103 : f32 to vector<8x128xf32>
    %338 = arith.addf %337, %336 : vector<8x128xf32>
    %339 = arith.divf %337, %338 : vector<8x128xf32>
    %340 = vector.extract_strided_slice %339 {offsets = [0, 0], sizes = [8, 32], strides = [1, 1]} : vector<8x128xf32> to vector<8x32xf32>
    %341 = vector.extract_strided_slice %339 {offsets = [0, 32], sizes = [8, 32], strides = [1, 1]} : vector<8x128xf32> to vector<8x32xf32>
    %342 = vector.extract_strided_slice %339 {offsets = [0, 64], sizes = [8, 32], strides = [1, 1]} : vector<8x128xf32> to vector<8x32xf32>
    %cst_104 = arith.constant 2.000000e+00 : f32
    %343 = vector.broadcast %cst_104 : f32 to vector<8x32xf32>
    %344 = arith.mulf %343, %342 : vector<8x32xf32>
    %cst_105 = arith.constant 1.000000e+00 : f32
    %345 = vector.broadcast %cst_105 : f32 to vector<8x32xf32>
    %346 = arith.subf %344, %345 : vector<8x32xf32>
    %347 = vector.extract_strided_slice %339 {offsets = [0, 96], sizes = [8, 32], strides = [1, 1]} : vector<8x128xf32> to vector<8x32xf32>
    %348 = arith.mulf %341, %328 : vector<8x32xf32>
    %349 = arith.mulf %340, %346 : vector<8x32xf32>
    %350 = arith.addf %348, %349 : vector<8x32xf32>
    %351 = math.tanh %350 : vector<8x32xf32>
    %352 = arith.mulf %347, %351 : vector<8x32xf32>
    %c48_106 = arith.constant 48 : index
    %c0_107 = arith.constant 0 : index
    %353 = vector.load %arg5[%c48_106, %c0_107] : memref<64x32xf32, #tpu.memory_space<vmem>>, vector<8x32xf32>
    tpu.vector_store %arg5[%c48_106, %c0_107], %352 {strides = array<i32>} : memref<64x32xf32, #tpu.memory_space<vmem>>, vector<8x32xf32>,
    %354 = vector.extract_strided_slice %197 {offsets = [56, 0], sizes = [8, 128], strides = [1, 1]} : vector<64x128xf32> to vector<8x128xf32>
    %cst_108 = arith.constant dense<0.000000e+00> : vector<8x128xf32>
    %355 = tpu.matmul %352, %191, %cst_108 {dimension_numbers = #tpu.dot_dimension_numbers<[1], [0], [0], [1], [0, 0, 1, 1], [], []>} : vector<8x32xf32>, vector<32x128xf32>, vector<8x128xf32> -> vector<8x128xf32>
    %356 = arith.addf %354, %355 : vector<8x128xf32>
    %357 = arith.negf %356 : vector<8x128xf32>
    %358 = math.exp %357 : vector<8x128xf32>
    %cst_109 = arith.constant 1.000000e+00 : f32
    %359 = vector.broadcast %cst_109 : f32 to vector<8x128xf32>
    %360 = arith.addf %359, %358 : vector<8x128xf32>
    %361 = arith.divf %359, %360 : vector<8x128xf32>
    %362 = vector.extract_strided_slice %361 {offsets = [0, 0], sizes = [8, 32], strides = [1, 1]} : vector<8x128xf32> to vector<8x32xf32>
    %363 = vector.extract_strided_slice %361 {offsets = [0, 32], sizes = [8, 32], strides = [1, 1]} : vector<8x128xf32> to vector<8x32xf32>
    %364 = vector.extract_strided_slice %361 {offsets = [0, 64], sizes = [8, 32], strides = [1, 1]} : vector<8x128xf32> to vector<8x32xf32>
    %cst_110 = arith.constant 2.000000e+00 : f32
    %365 = vector.broadcast %cst_110 : f32 to vector<8x32xf32>
    %366 = arith.mulf %365, %364 : vector<8x32xf32>
    %cst_111 = arith.constant 1.000000e+00 : f32
    %367 = vector.broadcast %cst_111 : f32 to vector<8x32xf32>
    %368 = arith.subf %366, %367 : vector<8x32xf32>
    %369 = vector.extract_strided_slice %361 {offsets = [0, 96], sizes = [8, 32], strides = [1, 1]} : vector<8x128xf32> to vector<8x32xf32>
    %370 = arith.mulf %363, %350 : vector<8x32xf32>
    %371 = arith.mulf %362, %368 : vector<8x32xf32>
    %372 = arith.addf %370, %371 : vector<8x32xf32>
    %373 = math.tanh %372 : vector<8x32xf32>
    %374 = arith.mulf %369, %373 : vector<8x32xf32>
    %c56_112 = arith.constant 56 : index
    %c0_113 = arith.constant 0 : index
    %375 = vector.load %arg5[%c56_112, %c0_113] : memref<64x32xf32, #tpu.memory_space<vmem>>, vector<8x32xf32>
    tpu.vector_store %arg5[%c56_112, %c0_113], %374 {strides = array<i32>} : memref<64x32xf32, #tpu.memory_space<vmem>>, vector<8x32xf32>,
    return
  }
  func.func @transform_0(%arg0: i32) -> (i32, i32) {
    %c0_i32 = arith.constant 0 : i32
    %c0_i32_0 = arith.constant 0 : i32
    %c0_i32_1 = arith.constant 0 : i32
    return %c0_i32, %c0_i32_0 : i32, i32
  }
  func.func @transform_1(%arg0: i32) -> (i32, i32, i32) {
    %c0_i32 = arith.constant 0 : i32
    %c0_i32_0 = arith.constant 0 : i32
    %c0_i32_1 = arith.constant 0 : i32
    %c0_i32_2 = arith.constant 0 : i32
    return %c0_i32, %c0_i32_0, %c0_i32_1 : i32, i32, i32
  }
  func.func @transform_2(%arg0: i32) -> (i32, i32, i32) {
    %c0_i32 = arith.constant 0 : i32
    %c0_i32_0 = arith.constant 0 : i32
    %c0_i32_1 = arith.constant 0 : i32
    %c0_i32_2 = arith.constant 0 : i32
    return %c0_i32, %c0_i32_0, %c0_i32_1 : i32, i32, i32
  }
  func.func @transform_3(%arg0: i32) -> (i32, i32, i32) {
    %c0_i32 = arith.constant 0 : i32
    %c0_i32_0 = arith.constant 0 : i32
    %c0_i32_1 = arith.constant 0 : i32
    %c0_i32_2 = arith.constant 0 : i32
    return %c0_i32, %c0_i32_0, %c0_i32_1 : i32, i32, i32
  }
  func.func @transform_4(%arg0: i32) -> (i32, i32) {
    %c0_i32 = arith.constant 0 : i32
    %c0_i32_0 = arith.constant 0 : i32
    %c0_i32_1 = arith.constant 0 : i32
    return %c0_i32, %c0_i32_0 : i32, i32
  }
}

</mosaic_0001>

<llo_original>
// kernel: block_lstm_forward.1
$region0: #{block_lstm_forward.1}
  #allocation0 [shape = 'u32[]', space=smem, size = 0x4, offset = 0x4, fixed_abs, tag = 'smem constant byte address 0x4 - core index']
  #allocation1 [shape = 'u32[72,128]{1,0:T(1,128)}', space=vmem, size = 0x9000, scoped, tag = 'internal scratch']
  #allocation2 [shape = 'f32[64,32]{1,0:T(8,128)}', space=vmem, size = 0x8000, scoped, tag = 'scratch operand']
  %s0 = inlined_call_operand.vmem [shape: f32[64,32], index: 0, kind: input, shape index: {}]
  %s1 = inlined_call_operand.vmem [shape: f32[2,32,128], index: 1, kind: input, shape index: {}]
  %s2 = inlined_call_operand.hbm [shape: f32[2,32,128], index: 2, kind: input, shape index: {}]
  %s3 = inlined_call_operand.vmem [shape: f32[2,1,128], index: 3, kind: input, shape index: {}]
  %s4 = inlined_call_operand.vmem [shape: f32[64,32], index: 4, kind: output, shape index: {}]
  %s5 = sld [smem:[#allocation0]]
  $region30: #{block_lstm_forward.1} parent=0
    _
  %s7 = ssub.s32 1, %s5
  %s8 = scalar_select 0, %s7, %s5
  $region1: #{block_lstm_forward.1} parent=0
    #allocation3 [shape = 'u8[32768]{0}', space=vmem, size = 0x8000, scoped, tag = 'input window, operand 2, single buffered']
    #allocation4 [shape = 's32[1]{0}', space=sflag, size = 0x4, scoped, tag = 'scoped memory for block_lstm_forward.1']
    %9 = vsyncpa [#allocation4], 0
    // Predicated region
    $region2: #{block_lstm_forward.1} parent=1 // pred_check
      _
    $region3: #{block_lstm_forward.1} parent=1 // pred_check_branch
      %11 = sbr.rel (0) target = $region5
    $region4: #{block_lstm_forward.1} parent=1 // pred_region
      _
    $region5: #{block_lstm_forward.1} parent=1 // pred_fallthru
      _
    // Predicated region
    $region6: #{block_lstm_forward.1} parent=1 // pred_check
      _
    $region7: #{block_lstm_forward.1} parent=1 // pred_check_branch
      %13 = sbr.rel (0) target = $region9
    $region8: #{block_lstm_forward.1} parent=1 // pred_region
      _
    $region9: #{block_lstm_forward.1} parent=1 // pred_fallthru
      _
    // Predicated region
    $region10: #{block_lstm_forward.1} parent=1 // pred_check
      _
    $region11: #{block_lstm_forward.1} parent=1 // pred_check_branch
      %15 = sbr.rel (0) target = $region13
    $region12: #{block_lstm_forward.1} parent=1 // pred_region
      %17 = vsyncadd [#allocation4], 0
      %s18 = sshll.u32 %s2, 4
      %s19 = int_to_ptr.hbm [resolvable:$true] %s18
      %s20 = sshll.u32 [#allocation3], 4
      %s21 = int_to_ptr.vmem [resolvable:$true] %s20
      %26 = dma.hbm_to_vmem [thread:$0]  %s19, 1024, %s21, [#allocation4], 128, 128, 8
    $region13: #{block_lstm_forward.1} parent=1 // pred_fallthru
      _
    // Predicated region
    $region14: #{block_lstm_forward.1} parent=1 // pred_check
      _
    $region15: #{block_lstm_forward.1} parent=1 // pred_check_branch
      %28 = sbr.rel (0) target = $region17
    $region16: #{block_lstm_forward.1} parent=1 // pred_region
      _
    $region17: #{block_lstm_forward.1} parent=1 // pred_fallthru
      _
    // Predicated region
    $region18: #{block_lstm_forward.1} parent=1 // pred_check
      _
    $region19: #{block_lstm_forward.1} parent=1 // pred_check_branch
      %30 = sbr.rel (0) target = $region21
    $region20: #{block_lstm_forward.1} parent=1 // pred_region
      %32 = dma.done [#allocation4], 1024
    $region21: #{block_lstm_forward.1} parent=1 // pred_fallthru
      _
    %v33 = vld [vmem:[%s1] sm:$0xff]
    %v34 = vld [vmem:[%s1 + $0x8] sm:$0xff]
    %v35 = vld [vmem:[%s1 + $0x10] sm:$0xff]
    %v36 = vld [vmem:[%s1 + $0x18] sm:$0xff]
    %v37 = vld [vmem:[#allocation3] sm:$0xff]
    %v38 = vld [vmem:[#allocation3 + $0x8] sm:$0xff]
    %v39 = vld [vmem:[#allocation3 + $0x10] sm:$0xff]
    %v40 = vld [vmem:[#allocation3 + $0x18] sm:$0xff]
    %v41 = vld [vmem:[%s3] sm:$0x1]
    %v42 = vld [vmem:[%s0] sm:$0xff]
    %v43 = vld [vmem:[%s0 + $0x8] sm:$0xff]
    %v44 = vld [vmem:[%s0 + $0x10] sm:$0xff]
    %v45 = vld [vmem:[%s0 + $0x18] sm:$0xff]
    %v46 = vld [vmem:[%s0 + $0x20] sm:$0xff]
    %v47 = vld [vmem:[%s0 + $0x28] sm:$0xff]
    %v48 = vld [vmem:[%s0 + $0x30] sm:$0xff]
    %v49 = vld [vmem:[%s0 + $0x38] sm:$0xff]
    %v51 = vperm.slane %v41, 0
    %vm53 = vcmask 261120
    %v55 = vsel %vm53, %v42, 0
    %v58 = vsel %vm53, %v43, 0
    %v61 = vsel %vm53, %v44, 0
    %v64 = vsel %vm53, %v45, 0
    %v67 = vsel %vm53, %v46, 0
    %v70 = vsel %vm53, %v47, 0
    %v73 = vsel %vm53, %v48, 0
    %v76 = vsel %vm53, %v49, 0
    %78 = vmatpush.msra.mxu0 0.0
    %79 = vmatpush.msra.mxu0 0.0
    %80 = vmatpush.msra.mxu0 0.0
    %81 = vmatpush.msra.mxu0 0.0
    %82 = vmatpush.msra.mxu0 0.0
    %83 = vmatpush.msra.mxu0 0.0
    %84 = vmatpush.msra.mxu0 0.0
    %85 = vmatpush.msra.mxu0 0.0
    %86 = vmatpush.msra.mxu0 0.0
    %87 = vmatpush.msra.mxu0 0.0
    %88 = vmatpush.msra.mxu0 0.0
    %89 = vmatpush.msra.mxu0 0.0
    %90 = vmatpush.msra.mxu0 %v36
    %91 = vmatpush.msra.mxu0 %v35
    %92 = vmatpush.msra.mxu0 %v34
    %93 = vmatpush.msra.mxu0 %v33
    %94 = vmatmul.f32.gmra.mxu0 %v55
    %v95 = vpop.f32.mrf.mxu0
    %v96 = vadd.f32 %v51, %v95
    %97 = vmatmul.f32.gmra.mxu0 %v58
    %v98 = vpop.f32.mrf.mxu0
    %v99 = vadd.f32 %v51, %v98
    %100 = vmatmul.f32.gmra.mxu0 %v61
    %v101 = vpop.f32.mrf.mxu0
    %v102 = vadd.f32 %v51, %v101
    %103 = vmatmul.f32.gmra.mxu0 %v64
    %v104 = vpop.f32.mrf.mxu0
    %v105 = vadd.f32 %v51, %v104
    %106 = vmatmul.f32.gmra.mxu0 %v67
    %v107 = vpop.f32.mrf.mxu0
    %v108 = vadd.f32 %v51, %v107
    %109 = vmatmul.f32.gmra.mxu0 %v70
    %v110 = vpop.f32.mrf.mxu0
    %v111 = vadd.f32 %v51, %v110
    %112 = vmatmul.f32.gmra.mxu0 %v73
    %v113 = vpop.f32.mrf.mxu0
    %v114 = vadd.f32 %v51, %v113
    %115 = vmatmul.f32.gmra.mxu0 %v76
    %v116 = vpop.f32.mrf.mxu0
    %v117 = vadd.f32 %v51, %v116
    %118 = vdwg.mxu0
    %v120 = vsel %vm53, 0.0, 0
    %122 = vmatpush.msra.mxu0 0.0
    %123 = vmatpush.msra.mxu0 0.0
    %124 = vmatpush.msra.mxu0 0.0
    %125 = vmatpush.msra.mxu0 0.0
    %126 = vmatpush.msra.mxu0 0.0
    %127 = vmatpush.msra.mxu0 0.0
    %128 = vmatpush.msra.mxu0 0.0
    %129 = vmatpush.msra.mxu0 0.0
    %130 = vmatpush.msra.mxu0 0.0
    %131 = vmatpush.msra.mxu0 0.0
    %132 = vmatpush.msra.mxu0 0.0
    %133 = vmatpush.msra.mxu0 0.0
    %134 = vmatpush.msra.mxu0 %v40
    %135 = vmatpush.msra.mxu0 %v39
    %136 = vmatpush.msra.mxu0 %v38
    %137 = vmatpush.msra.mxu0 %v37
    %138 = vmatmul.f32.gmra.mxu0 %v120
    %v139 = vpop.f32.mrf.mxu0
    %v140 = vadd.f32 0.0, %v139
    %141 = vdwg.mxu0
    %v142 = vadd.f32 %v96, %v140
    %v143 = vxor.u32 %v142, 2147483648
    %v144 = vmul.f32 %v143, 1.442695
    %v145 = vpow.pop %v144
    %v146 = vadd.f32 %v145, 1.0
    %v147 = vrcp.pop %v146
    %v148 = vmul.f32 %v146, %v147
    %v149 = vsub.f32 1.0, %v148
    %v150 = vmul.f32 %v147, %v149
    %v151 = vadd.f32 %v147, %v150
    %vm152 = vweird.f32 %v146
    %vm153 = vweird.f32 %v147
    %vm154 = vmor %vm152, %vm153
    %v155 = vsel %vm154, %v147, %v151
    %v156 = vand.u32 2147483647, %v146
    %vm157 = vcmp.eq.f32.partialorder %v156, 8.507059e+37
    %v158 = vand.u32 %v146, 2147483648
    %v159 = vor.u32 1.1754944e-38, %v158
    %v160 = vsel %vm157, %v159, %v155
    %v161 = vmul.f32 1.0, %v160
    %v162 = vmul.f32 %v161, 2.0
    %v163 = vsub.f32 %v162, 1.0
    %v164 = vmul.f32 %v161, 0.0
    %166 = vrot.lane.b32.xlu0 %v163, 64
    %v167 = vpop.permute.xlu0 %166
    %v169 = vmul.f32 %v161, %v167
    %171 = vrot.lane.b32.xlu0 %v169, 32
    %v172 = vpop.permute.xlu0 %171
    %v174 = vadd.f32 %v164, %v172
    %v175 = vtanh.pop %v174
    %177 = vrot.lane.b32.xlu0 %v175, 64
    %v178 = vpop.permute.xlu0 %177
    %v180 = vmul.f32 %v161, %v178
    %182 = vrot.lane.b32.xlu0 %v180, 32
    %v183 = vpop.permute.xlu0 %182
    %185 = vst.msk [vmem:[#allocation2] sm:$0xff] %vm53, %v183
    %v186 = vsel %vm53, %v183, 0
    %188 = vmatpush.msra.mxu0 0.0
    %189 = vmatpush.msra.mxu0 0.0
    %190 = vmatpush.msra.mxu0 0.0
    %191 = vmatpush.msra.mxu0 0.0
    %192 = vmatpush.msra.mxu0 0.0
    %193 = vmatpush.msra.mxu0 0.0
    %194 = vmatpush.msra.mxu0 0.0
    %195 = vmatpush.msra.mxu0 0.0
    %196 = vmatpush.msra.mxu0 0.0
    %197 = vmatpush.msra.mxu0 0.0
    %198 = vmatpush.msra.mxu0 0.0
    %199 = vmatpush.msra.mxu0 0.0
    %200 = vmatpush.msra.mxu0 %v40
    %201 = vmatpush.msra.mxu0 %v39
    %202 = vmatpush.msra.mxu0 %v38
    %203 = vmatpush.msra.mxu0 %v37
    %204 = vmatmul.f32.gmra.mxu0 %v186
    %v205 = vpop.f32.mrf.mxu0
    %v206 = vadd.f32 0.0, %v205
    %207 = vdwg.mxu0
    %v208 = vadd.f32 %v99, %v206
    %v209 = vxor.u32 %v208, 2147483648
    %v210 = vmul.f32 %v209, 1.442695
    %v211 = vpow.pop %v210
    %v212 = vadd.f32 %v211, 1.0
    %v213 = vrcp.pop %v212
    %v214 = vmul.f32 %v212, %v213
    %v215 = vsub.f32 1.0, %v214
    %v216 = vmul.f32 %v213, %v215
    %v217 = vadd.f32 %v213, %v216
    %vm218 = vweird.f32 %v212
    %vm219 = vweird.f32 %v213
    %vm220 = vmor %vm218, %vm219
    %v221 = vsel %vm220, %v213, %v217
    %v222 = vand.u32 2147483647, %v212
    %vm223 = vcmp.eq.f32.partialorder %v222, 8.507059e+37
    %v224 = vand.u32 %v212, 2147483648
    %v225 = vor.u32 1.1754944e-38, %v224
    %v226 = vsel %vm223, %v225, %v221
    %v227 = vmul.f32 1.0, %v226
    %v228 = vmul.f32 %v227, 2.0
    %v229 = vsub.f32 %v228, 1.0
    %v230 = vmul.f32 %v227, %v174
    %232 = vrot.lane.b32.xlu0 %v229, 64
    %v233 = vpop.permute.xlu0 %232
    %v235 = vmul.f32 %v227, %v233
    %237 = vrot.lane.b32.xlu0 %v235, 32
    %v238 = vpop.permute.xlu0 %237
    %v240 = vadd.f32 %v230, %v238
    %v241 = vtanh.pop %v240
    %243 = vrot.lane.b32.xlu0 %v241, 64
    %v244 = vpop.permute.xlu0 %243
    %v246 = vmul.f32 %v227, %v244
    %248 = vrot.lane.b32.xlu0 %v246, 32
    %v249 = vpop.permute.xlu0 %248
    %251 = vst.msk [vmem:[#allocation2 + $0x8] sm:$0xff] %vm53, %v249
    %v252 = vsel %vm53, %v249, 0
    %254 = vmatpush.msra.mxu0 0.0
    %255 = vmatpush.msra.mxu0 0.0
    %256 = vmatpush.msra.mxu0 0.0
    %257 = vmatpush.msra.mxu0 0.0
    %258 = vmatpush.msra.mxu0 0.0
    %259 = vmatpush.msra.mxu0 0.0
    %260 = vmatpush.msra.mxu0 0.0
    %261 = vmatpush.msra.mxu0 0.0
    %262 = vmatpush.msra.mxu0 0.0
    %263 = vmatpush.msra.mxu0 0.0
    %264 = vmatpush.msra.mxu0 0.0
    %265 = vmatpush.msra.mxu0 0.0
    %266 = vmatpush.msra.mxu0 %v40
    %267 = vmatpush.msra.mxu0 %v39
    %268 = vmatpush.msra.mxu0 %v38
    %269 = vmatpush.msra.mxu0 %v37
    %270 = vmatmul.f32.gmra.mxu0 %v252
    %v271 = vpop.f32.mrf.mxu0
    %v272 = vadd.f32 0.0, %v271
    %273 = vdwg.mxu0
    %v274 = vadd.f32 %v102, %v272
    %v275 = vxor.u32 %v274, 2147483648
    %v276 = vmul.f32 %v275, 1.442695
    %v277 = vpow.pop %v276
    %v278 = vadd.f32 %v277, 1.0
    %v279 = vrcp.pop %v278
    %v280 = vmul.f32 %v278, %v279
    %v281 = vsub.f32 1.0, %v280
    %v282 = vmul.f32 %v279, %v281
    %v283 = vadd.f32 %v279, %v282
    %vm284 = vweird.f32 %v278
    %vm285 = vweird.f32 %v279
    %vm286 = vmor %vm284, %vm285
    %v287 = vsel %vm286, %v279, %v283
    %v288 = vand.u32 2147483647, %v278
    %vm289 = vcmp.eq.f32.partialorder %v288, 8.507059e+37
    %v290 = vand.u32 %v278, 2147483648
    %v291 = vor.u32 1.1754944e-38, %v290
    %v292 = vsel %vm289, %v291, %v287
    %v293 = vmul.f32 1.0, %v292
    %v294 = vmul.f32 %v293, 2.0
    %v295 = vsub.f32 %v294, 1.0
    %v296 = vmul.f32 %v293, %v240
    %298 = vrot.lane.b32.xlu0 %v295, 64
    %v299 = vpop.permute.xlu0 %298
    %v301 = vmul.f32 %v293, %v299
    %303 = vrot.lane.b32.xlu0 %v301, 32
    %v304 = vpop.permute.xlu0 %303
    %v306 = vadd.f32 %v296, %v304
    %v307 = vtanh.pop %v306
    %309 = vrot.lane.b32.xlu0 %v307, 64
    %v310 = vpop.permute.xlu0 %309
    %v312 = vmul.f32 %v293, %v310
    %314 = vrot.lane.b32.xlu0 %v312, 32
    %v315 = vpop.permute.xlu0 %314
    %317 = vst.msk [vmem:[#allocation2 + $0x10] sm:$0xff] %vm53, %v315
    %v318 = vsel %vm53, %v315, 0
    %320 = vmatpush.msra.mxu0 0.0
    %321 = vmatpush.msra.mxu0 0.0
    %322 = vmatpush.msra.mxu0 0.0
    %323 = vmatpush.msra.mxu0 0.0
    %324 = vmatpush.msra.mxu0 0.0
    %325 = vmatpush.msra.mxu0 0.0
    %326 = vmatpush.msra.mxu0 0.0
    %327 = vmatpush.msra.mxu0 0.0
    %328 = vmatpush.msra.mxu0 0.0
    %329 = vmatpush.msra.mxu0 0.0
    %330 = vmatpush.msra.mxu0 0.0
    %331 = vmatpush.msra.mxu0 0.0
    %332 = vmatpush.msra.mxu0 %v40
    %333 = vmatpush.msra.mxu0 %v39
    %334 = vmatpush.msra.mxu0 %v38
    %335 = vmatpush.msra.mxu0 %v37
    %336 = vmatmul.f32.gmra.mxu0 %v318
    %v337 = vpop.f32.mrf.mxu0
    %v338 = vadd.f32 0.0, %v337
    %339 = vdwg.mxu0
    %v340 = vadd.f32 %v105, %v338
    %v341 = vxor.u32 %v340, 2147483648
    %v342 = vmul.f32 %v341, 1.442695
    %v343 = vpow.pop %v342
    %v344 = vadd.f32 %v343, 1.0
    %v345 = vrcp.pop %v344
    %v346 = vmul.f32 %v344, %v345
    %v347 = vsub.f32 1.0, %v346
    %v348 = vmul.f32 %v345, %v347
    %v349 = vadd.f32 %v345, %v348
    %vm350 = vweird.f32 %v344
    %vm351 = vweird.f32 %v345
    %vm352 = vmor %vm350, %vm351
    %v353 = vsel %vm352, %v345, %v349
    %v354 = vand.u32 2147483647, %v344
    %vm355 = vcmp.eq.f32.partialorder %v354, 8.507059e+37
    %v356 = vand.u32 %v344, 2147483648
    %v357 = vor.u32 1.1754944e-38, %v356
    %v358 = vsel %vm355, %v357, %v353
    %v359 = vmul.f32 1.0, %v358
    %v360 = vmul.f32 %v359, 2.0
    %v361 = vsub.f32 %v360, 1.0
    %v362 = vmul.f32 %v359, %v306
    %364 = vrot.lane.b32.xlu0 %v361, 64
    %v365 = vpop.permute.xlu0 %364
    %v367 = vmul.f32 %v359, %v365
    %369 = vrot.lane.b32.xlu0 %v367, 32
    %v370 = vpop.permute.xlu0 %369
    %v372 = vadd.f32 %v362, %v370
    %v373 = vtanh.pop %v372
    %375 = vrot.lane.b32.xlu0 %v373, 64
    %v376 = vpop.permute.xlu0 %375
    %v378 = vmul.f32 %v359, %v376
    %380 = vrot.lane.b32.xlu0 %v378, 32
    %v381 = vpop.permute.xlu0 %380
    %383 = vst.msk [vmem:[#allocation2 + $0x18] sm:$0xff] %vm53, %v381
    %v384 = vsel %vm53, %v381, 0
    %386 = vmatpush.msra.mxu0 0.0
    %387 = vmatpush.msra.mxu0 0.0
    %388 = vmatpush.msra.mxu0 0.0
    %389 = vmatpush.msra.mxu0 0.0
    %390 = vmatpush.msra.mxu0 0.0
    %391 = vmatpush.msra.mxu0 0.0
    %392 = vmatpush.msra.mxu0 0.0
    %393 = vmatpush.msra.mxu0 0.0
    %394 = vmatpush.msra.mxu0 0.0
    %395 = vmatpush.msra.mxu0 0.0
    %396 = vmatpush.msra.mxu0 0.0
    %397 = vmatpush.msra.mxu0 0.0
    %398 = vmatpush.msra.mxu0 %v40
    %399 = vmatpush.msra.mxu0 %v39
    %400 = vmatpush.msra.mxu0 %v38
    %401 = vmatpush.msra.mxu0 %v37
    %402 = vmatmul.f32.gmra.mxu0 %v384
    %v403 = vpop.f32.mrf.mxu0
    %v404 = vadd.f32 0.0, %v403
    %405 = vdwg.mxu0
    %v406 = vadd.f32 %v108, %v404
    %v407 = vxor.u32 %v406, 2147483648
    %v408 = vmul.f32 %v407, 1.442695
    %v409 = vpow.pop %v408
    %v410 = vadd.f32 %v409, 1.0
    %v411 = vrcp.pop %v410
    %v412 = vmul.f32 %v410, %v411
    %v413 = vsub.f32 1.0, %v412
    %v414 = vmul.f32 %v411, %v413
    %v415 = vadd.f32 %v411, %v414
    %vm416 = vweird.f32 %v410
    %vm417 = vweird.f32 %v411
    %vm418 = vmor %vm416, %vm417
    %v419 = vsel %vm418, %v411, %v415
    %v420 = vand.u32 2147483647, %v410
    %vm421 = vcmp.eq.f32.partialorder %v420, 8.507059e+37
    %v422 = vand.u32 %v410, 2147483648
    %v423 = vor.u32 1.1754944e-38, %v422
    %v424 = vsel %vm421, %v423, %v419
    %v425 = vmul.f32 1.0, %v424
    %v426 = vmul.f32 %v425, 2.0
    %v427 = vsub.f32 %v426, 1.0
    %v428 = vmul.f32 %v425, %v372
    %430 = vrot.lane.b32.xlu0 %v427, 64
    %v431 = vpop.permute.xlu0 %430
    %v433 = vmul.f32 %v425, %v431
    %435 = vrot.lane.b32.xlu0 %v433, 32
    %v436 = vpop.permute.xlu0 %435
    %v438 = vadd.f32 %v428, %v436
    %v439 = vtanh.pop %v438
    %441 = vrot.lane.b32.xlu0 %v439, 64
    %v442 = vpop.permute.xlu0 %441
    %v444 = vmul.f32 %v425, %v442
    %446 = vrot.lane.b32.xlu0 %v444, 32
    %v447 = vpop.permute.xlu0 %446
    %449 = vst.msk [vmem:[#allocation2 + $0x20] sm:$0xff] %vm53, %v447
    %v450 = vsel %vm53, %v447, 0
    %452 = vmatpush.msra.mxu0 0.0
    %453 = vmatpush.msra.mxu0 0.0
    %454 = vmatpush.msra.mxu0 0.0
    %455 = vmatpush.msra.mxu0 0.0
    %456 = vmatpush.msra.mxu0 0.0
    %457 = vmatpush.msra.mxu0 0.0
    %458 = vmatpush.msra.mxu0 0.0
    %459 = vmatpush.msra.mxu0 0.0
    %460 = vmatpush.msra.mxu0 0.0
    %461 = vmatpush.msra.mxu0 0.0
    %462 = vmatpush.msra.mxu0 0.0
    %463 = vmatpush.msra.mxu0 0.0
    %464 = vmatpush.msra.mxu0 %v40
    %465 = vmatpush.msra.mxu0 %v39
    %466 = vmatpush.msra.mxu0 %v38
    %467 = vmatpush.msra.mxu0 %v37
    %468 = vmatmul.f32.gmra.mxu0 %v450
    %v469 = vpop.f32.mrf.mxu0
    %v470 = vadd.f32 0.0, %v469
    %471 = vdwg.mxu0
    %v472 = vadd.f32 %v111, %v470
    %v473 = vxor.u32 %v472, 2147483648
    %v474 = vmul.f32 %v473, 1.442695
    %v475 = vpow.pop %v474
    %v476 = vadd.f32 %v475, 1.0
    %v477 = vrcp.pop %v476
    %v478 = vmul.f32 %v476, %v477
    %v479 = vsub.f32 1.0, %v478
    %v480 = vmul.f32 %v477, %v479
    %v481 = vadd.f32 %v477, %v480
    %vm482 = vweird.f32 %v476
    %vm483 = vweird.f32 %v477
    %vm484 = vmor %vm482, %vm483
    %v485 = vsel %vm484, %v477, %v481
    %v486 = vand.u32 2147483647, %v476
    %vm487 = vcmp.eq.f32.partialorder %v486, 8.507059e+37
    %v488 = vand.u32 %v476, 2147483648
    %v489 = vor.u32 1.1754944e-38, %v488
    %v490 = vsel %vm487, %v489, %v485
    %v491 = vmul.f32 1.0, %v490
    %v492 = vmul.f32 %v491, 2.0
    %v493 = vsub.f32 %v492, 1.0
    %v494 = vmul.f32 %v491, %v438
    %496 = vrot.lane.b32.xlu0 %v493, 64
    %v497 = vpop.permute.xlu0 %496
    %v499 = vmul.f32 %v491, %v497
    %501 = vrot.lane.b32.xlu0 %v499, 32
    %v502 = vpop.permute.xlu0 %501
    %v504 = vadd.f32 %v494, %v502
    %v505 = vtanh.pop %v504
    %507 = vrot.lane.b32.xlu0 %v505, 64
    %v508 = vpop.permute.xlu0 %507
    %v510 = vmul.f32 %v491, %v508
    %512 = vrot.lane.b32.xlu0 %v510, 32
    %v513 = vpop.permute.xlu0 %512
    %515 = vst.msk [vmem:[#allocation2 + $0x28] sm:$0xff] %vm53, %v513
    %v516 = vsel %vm53, %v513, 0
    %518 = vmatpush.msra.mxu0 0.0
    %519 = vmatpush.msra.mxu0 0.0
    %520 = vmatpush.msra.mxu0 0.0
    %521 = vmatpush.msra.mxu0 0.0
    %522 = vmatpush.msra.mxu0 0.0
    %523 = vmatpush.msra.mxu0 0.0
    %524 = vmatpush.msra.mxu0 0.0
    %525 = vmatpush.msra.mxu0 0.0
    %526 = vmatpush.msra.mxu0 0.0
    %527 = vmatpush.msra.mxu0 0.0
    %528 = vmatpush.msra.mxu0 0.0
    %529 = vmatpush.msra.mxu0 0.0
    %530 = vmatpush.msra.mxu0 %v40
    %531 = vmatpush.msra.mxu0 %v39
    %532 = vmatpush.msra.mxu0 %v38
    %533 = vmatpush.msra.mxu0 %v37
    %534 = vmatmul.f32.gmra.mxu0 %v516
    %v535 = vpop.f32.mrf.mxu0
    %v536 = vadd.f32 0.0, %v535
    %537 = vdwg.mxu0
    %v538 = vadd.f32 %v114, %v536
    %v539 = vxor.u32 %v538, 2147483648
    %v540 = vmul.f32 %v539, 1.442695
    %v541 = vpow.pop %v540
    %v542 = vadd.f32 %v541, 1.0
    %v543 = vrcp.pop %v542
    %v544 = vmul.f32 %v542, %v543
    %v545 = vsub.f32 1.0, %v544
    %v546 = vmul.f32 %v543, %v545
    %v547 = vadd.f32 %v543, %v546
    %vm548 = vweird.f32 %v542
    %vm549 = vweird.f32 %v543
    %vm550 = vmor %vm548, %vm549
    %v551 = vsel %vm550, %v543, %v547
    %v552 = vand.u32 2147483647, %v542
    %vm553 = vcmp.eq.f32.partialorder %v552, 8.507059e+37
    %v554 = vand.u32 %v542, 2147483648
    %v555 = vor.u32 1.1754944e-38, %v554
    %v556 = vsel %vm553, %v555, %v551
    %v557 = vmul.f32 1.0, %v556
    %v558 = vmul.f32 %v557, 2.0
    %v559 = vsub.f32 %v558, 1.0
    %v560 = vmul.f32 %v557, %v504
    %562 = vrot.lane.b32.xlu0 %v559, 64
    %v563 = vpop.permute.xlu0 %562
    %v565 = vmul.f32 %v557, %v563
    %567 = vrot.lane.b32.xlu0 %v565, 32
    %v568 = vpop.permute.xlu0 %567
    %v570 = vadd.f32 %v560, %v568
    %v571 = vtanh.pop %v570
    %573 = vrot.lane.b32.xlu0 %v571, 64
    %v574 = vpop.permute.xlu0 %573
    %v576 = vmul.f32 %v557, %v574
    %578 = vrot.lane.b32.xlu0 %v576, 32
    %v579 = vpop.permute.xlu0 %578
    %581 = vst.msk [vmem:[#allocation2 + $0x30] sm:$0xff] %vm53, %v579
    %v582 = vsel %vm53, %v579, 0
    %584 = vmatpush.msra.mxu0 0.0
    %585 = vmatpush.msra.mxu0 0.0
    %586 = vmatpush.msra.mxu0 0.0
    %587 = vmatpush.msra.mxu0 0.0
    %588 = vmatpush.msra.mxu0 0.0
    %589 = vmatpush.msra.mxu0 0.0
    %590 = vmatpush.msra.mxu0 0.0
    %591 = vmatpush.msra.mxu0 0.0
    %592 = vmatpush.msra.mxu0 0.0
    %593 = vmatpush.msra.mxu0 0.0
    %594 = vmatpush.msra.mxu0 0.0
    %595 = vmatpush.msra.mxu0 0.0
    %596 = vmatpush.msra.mxu0 %v40
    %597 = vmatpush.msra.mxu0 %v39
    %598 = vmatpush.msra.mxu0 %v38
    %599 = vmatpush.msra.mxu0 %v37
    %600 = vmatmul.f32.gmra.mxu0 %v582
    %v601 = vpop.f32.mrf.mxu0
    %v602 = vadd.f32 0.0, %v601
    %603 = vdwg.mxu0
    %v604 = vadd.f32 %v117, %v602
    %v605 = vxor.u32 %v604, 2147483648
    %v606 = vmul.f32 %v605, 1.442695
    %v607 = vpow.pop %v606
    %v608 = vadd.f32 %v607, 1.0
    %v609 = vrcp.pop %v608
    %v610 = vmul.f32 %v608, %v609
    %v611 = vsub.f32 1.0, %v610
    %v612 = vmul.f32 %v609, %v611
    %v613 = vadd.f32 %v609, %v612
    %vm614 = vweird.f32 %v608
    %vm615 = vweird.f32 %v609
    %vm616 = vmor %vm614, %vm615
    %v617 = vsel %vm616, %v609, %v613
    %v618 = vand.u32 2147483647, %v608
    %vm619 = vcmp.eq.f32.partialorder %v618, 8.507059e+37
    %v620 = vand.u32 %v608, 2147483648
    %v621 = vor.u32 1.1754944e-38, %v620
    %v622 = vsel %vm619, %v621, %v617
    %v623 = vmul.f32 1.0, %v622
    %v624 = vmul.f32 %v623, 2.0
    %v625 = vsub.f32 %v624, 1.0
    %v626 = vmul.f32 %v623, %v570
    %628 = vrot.lane.b32.xlu0 %v625, 64
    %v629 = vpop.permute.xlu0 %628
    %v631 = vmul.f32 %v623, %v629
    %633 = vrot.lane.b32.xlu0 %v631, 32
    %v634 = vpop.permute.xlu0 %633
    %v636 = vadd.f32 %v626, %v634
    %v637 = vtanh.pop %v636
    %639 = vrot.lane.b32.xlu0 %v637, 64
    %v640 = vpop.permute.xlu0 %639
    %v642 = vmul.f32 %v623, %v640
    %644 = vrot.lane.b32.xlu0 %v642, 32
    %v645 = vpop.permute.xlu0 %644
    %647 = vst.msk [vmem:[#allocation2 + $0x38] sm:$0xff] %vm53, %v645
    %s648 = scalar_lea.vmem %s1, 32
    %v649 = vld [vmem:[%s648] sm:$0xff]
    %v650 = vld [vmem:[%s648 + $0x8] sm:$0xff]
    %v651 = vld [vmem:[%s648 + $0x10] sm:$0xff]
    %v652 = vld [vmem:[%s648 + $0x18] sm:$0xff]
    %s653 = scalar_lea.vmem [#allocation3], 32
    %v654 = vld [vmem:[%s653] sm:$0xff]
    %v655 = vld [vmem:[%s653 + $0x8] sm:$0xff]
    %v656 = vld [vmem:[%s653 + $0x10] sm:$0xff]
    %v657 = vld [vmem:[%s653 + $0x18] sm:$0xff]
    %s658 = scalar_lea.vmem %s3, 1
    %v659 = vld [vmem:[%s658] sm:$0x1]
    %v660 = vld [vmem:[#allocation2] sm:$0xff]
    %v661 = vld [vmem:[#allocation2 + $0x8] sm:$0xff]
    %v662 = vld [vmem:[#allocation2 + $0x10] sm:$0xff]
    %v663 = vld [vmem:[#allocation2 + $0x18] sm:$0xff]
    %v664 = vld [vmem:[#allocation2 + $0x20] sm:$0xff]
    %v665 = vld [vmem:[#allocation2 + $0x28] sm:$0xff]
    %v666 = vld [vmem:[#allocation2 + $0x30] sm:$0xff]
    %v667 = vld [vmem:[#allocation2 + $0x38] sm:$0xff]
    %v669 = vperm.slane %v659, 0
    %v672 = vsel %vm53, %v660, 0
    %v675 = vsel %vm53, %v661, 0
    %v678 = vsel %vm53, %v662, 0
    %v681 = vsel %vm53, %v663, 0
    %v684 = vsel %vm53, %v664, 0
    %v687 = vsel %vm53, %v665, 0
    %v690 = vsel %vm53, %v666, 0
    %v693 = vsel %vm53, %v667, 0
    %695 = vmatpush.msra.mxu0 0.0
    %696 = vmatpush.msra.mxu0 0.0
    %697 = vmatpush.msra.mxu0 0.0
    %698 = vmatpush.msra.mxu0 0.0
    %699 = vmatpush.msra.mxu0 0.0
    %700 = vmatpush.msra.mxu0 0.0
    %701 = vmatpush.msra.mxu0 0.0
    %702 = vmatpush.msra.mxu0 0.0
    %703 = vmatpush.msra.mxu0 0.0
    %704 = vmatpush.msra.mxu0 0.0
    %705 = vmatpush.msra.mxu0 0.0
    %706 = vmatpush.msra.mxu0 0.0
    %707 = vmatpush.msra.mxu0 %v652
    %708 = vmatpush.msra.mxu0 %v651
    %709 = vmatpush.msra.mxu0 %v650
    %710 = vmatpush.msra.mxu0 %v649
    %711 = vmatmul.f32.gmra.mxu0 %v672
    %v712 = vpop.f32.mrf.mxu0
    %v713 = vadd.f32 %v669, %v712
    %714 = vmatmul.f32.gmra.mxu0 %v675
    %v715 = vpop.f32.mrf.mxu0
    %v716 = vadd.f32 %v669, %v715
    %717 = vmatmul.f32.gmra.mxu0 %v678
    %v718 = vpop.f32.mrf.mxu0
    %v719 = vadd.f32 %v669, %v718
    %720 = vmatmul.f32.gmra.mxu0 %v681
    %v721 = vpop.f32.mrf.mxu0
    %v722 = vadd.f32 %v669, %v721
    %723 = vmatmul.f32.gmra.mxu0 %v684
    %v724 = vpop.f32.mrf.mxu0
    %v725 = vadd.f32 %v669, %v724
    %726 = vmatmul.f32.gmra.mxu0 %v687
    %v727 = vpop.f32.mrf.mxu0
    %v728 = vadd.f32 %v669, %v727
    %729 = vmatmul.f32.gmra.mxu0 %v690
    %v730 = vpop.f32.mrf.mxu0
    %v731 = vadd.f32 %v669, %v730
    %732 = vmatmul.f32.gmra.mxu0 %v693
    %v733 = vpop.f32.mrf.mxu0
    %v734 = vadd.f32 %v669, %v733
    %735 = vdwg.mxu0
    %736 = vmatpush.msra.mxu0 0.0
    %737 = vmatpush.msra.mxu0 0.0
    %738 = vmatpush.msra.mxu0 0.0
    %739 = vmatpush.msra.mxu0 0.0
    %740 = vmatpush.msra.mxu0 0.0
    %741 = vmatpush.msra.mxu0 0.0
    %742 = vmatpush.msra.mxu0 0.0
    %743 = vmatpush.msra.mxu0 0.0
    %744 = vmatpush.msra.mxu0 0.0
    %745 = vmatpush.msra.mxu0 0.0
    %746 = vmatpush.msra.mxu0 0.0
    %747 = vmatpush.msra.mxu0 0.0
    %748 = vmatpush.msra.mxu0 %v657
    %749 = vmatpush.msra.mxu0 %v656
    %750 = vmatpush.msra.mxu0 %v655
    %751 = vmatpush.msra.mxu0 %v654
    %752 = vmatmul.f32.gmra.mxu0 %v120
    %v753 = vpop.f32.mrf.mxu0
    %v754 = vadd.f32 0.0, %v753
    %755 = vdwg.mxu0
    %v756 = vadd.f32 %v713, %v754
    %v757 = vxor.u32 %v756, 2147483648
    %v758 = vmul.f32 %v757, 1.442695
    %v759 = vpow.pop %v758
    %v760 = vadd.f32 %v759, 1.0
    %v761 = vrcp.pop %v760
    %v762 = vmul.f32 %v760, %v761
    %v763 = vsub.f32 1.0, %v762
    %v764 = vmul.f32 %v761, %v763
    %v765 = vadd.f32 %v761, %v764
    %vm766 = vweird.f32 %v760
    %vm767 = vweird.f32 %v761
    %vm768 = vmor %vm766, %vm767
    %v769 = vsel %vm768, %v761, %v765
    %v770 = vand.u32 2147483647, %v760
    %vm771 = vcmp.eq.f32.partialorder %v770, 8.507059e+37
    %v772 = vand.u32 %v760, 2147483648
    %v773 = vor.u32 1.1754944e-38, %v772
    %v774 = vsel %vm771, %v773, %v769
    %v775 = vmul.f32 1.0, %v774
    %v776 = vmul.f32 %v775, 2.0
    %v777 = vsub.f32 %v776, 1.0
    %v778 = vmul.f32 %v775, 0.0
    %780 = vrot.lane.b32.xlu0 %v777, 64
    %v781 = vpop.permute.xlu0 %780
    %v783 = vmul.f32 %v775, %v781
    %785 = vrot.lane.b32.xlu0 %v783, 32
    %v786 = vpop.permute.xlu0 %785
    %v788 = vadd.f32 %v778, %v786
    %v789 = vtanh.pop %v788
    %791 = vrot.lane.b32.xlu0 %v789, 64
    %v792 = vpop.permute.xlu0 %791
    %v794 = vmul.f32 %v775, %v792
    %796 = vrot.lane.b32.xlu0 %v794, 32
    %v797 = vpop.permute.xlu0 %796
    %799 = vst.msk [vmem:[%s4] sm:$0xff] %vm53, %v797
    %v800 = vsel %vm53, %v797, 0
    %802 = vmatpush.msra.mxu0 0.0
    %803 = vmatpush.msra.mxu0 0.0
    %804 = vmatpush.msra.mxu0 0.0
    %805 = vmatpush.msra.mxu0 0.0
    %806 = vmatpush.msra.mxu0 0.0
    %807 = vmatpush.msra.mxu0 0.0
    %808 = vmatpush.msra.mxu0 0.0
    %809 = vmatpush.msra.mxu0 0.0
    %810 = vmatpush.msra.mxu0 0.0
    %811 = vmatpush.msra.mxu0 0.0
    %812 = vmatpush.msra.mxu0 0.0
    %813 = vmatpush.msra.mxu0 0.0
    %814 = vmatpush.msra.mxu0 %v657
    %815 = vmatpush.msra.mxu0 %v656
    %816 = vmatpush.msra.mxu0 %v655
    %817 = vmatpush.msra.mxu0 %v654
    %818 = vmatmul.f32.gmra.mxu0 %v800
    %v819 = vpop.f32.mrf.mxu0
    %v820 = vadd.f32 0.0, %v819
    %821 = vdwg.mxu0
    %v822 = vadd.f32 %v716, %v820
    %v823 = vxor.u32 %v822, 2147483648
    %v824 = vmul.f32 %v823, 1.442695
    %v825 = vpow.pop %v824
    %v826 = vadd.f32 %v825, 1.0
    %v827 = vrcp.pop %v826
    %v828 = vmul.f32 %v826, %v827
    %v829 = vsub.f32 1.0, %v828
    %v830 = vmul.f32 %v827, %v829
    %v831 = vadd.f32 %v827, %v830
    %vm832 = vweird.f32 %v826
    %vm833 = vweird.f32 %v827
    %vm834 = vmor %vm832, %vm833
    %v835 = vsel %vm834, %v827, %v831
    %v836 = vand.u32 2147483647, %v826
    %vm837 = vcmp.eq.f32.partialorder %v836, 8.507059e+37
    %v838 = vand.u32 %v826, 2147483648
    %v839 = vor.u32 1.1754944e-38, %v838
    %v840 = vsel %vm837, %v839, %v835
    %v841 = vmul.f32 1.0, %v840
    %v842 = vmul.f32 %v841, 2.0
    %v843 = vsub.f32 %v842, 1.0
    %v844 = vmul.f32 %v841, %v788
    %846 = vrot.lane.b32.xlu0 %v843, 64
    %v847 = vpop.permute.xlu0 %846
    %v849 = vmul.f32 %v841, %v847
    %851 = vrot.lane.b32.xlu0 %v849, 32
    %v852 = vpop.permute.xlu0 %851
    %v854 = vadd.f32 %v844, %v852
    %v855 = vtanh.pop %v854
    %857 = vrot.lane.b32.xlu0 %v855, 64
    %v858 = vpop.permute.xlu0 %857
    %v860 = vmul.f32 %v841, %v858
    %862 = vrot.lane.b32.xlu0 %v860, 32
    %v863 = vpop.permute.xlu0 %862
    %865 = vst.msk [vmem:[%s4 + $0x8] sm:$0xff] %vm53, %v863
    %v866 = vsel %vm53, %v863, 0
    %868 = vmatpush.msra.mxu0 0.0
    %869 = vmatpush.msra.mxu0 0.0
    %870 = vmatpush.msra.mxu0 0.0
    %871 = vmatpush.msra.mxu0 0.0
    %872 = vmatpush.msra.mxu0 0.0
    %873 = vmatpush.msra.mxu0 0.0
    %874 = vmatpush.msra.mxu0 0.0
    %875 = vmatpush.msra.mxu0 0.0
    %876 = vmatpush.msra.mxu0 0.0
    %877 = vmatpush.msra.mxu0 0.0
    %878 = vmatpush.msra.mxu0 0.0
    %879 = vmatpush.msra.mxu0 0.0
    %880 = vmatpush.msra.mxu0 %v657
    %881 = vmatpush.msra.mxu0 %v656
    %882 = vmatpush.msra.mxu0 %v655
    %883 = vmatpush.msra.mxu0 %v654
    %884 = vmatmul.f32.gmra.mxu0 %v866
    %v885 = vpop.f32.mrf.mxu0
    %v886 = vadd.f32 0.0, %v885
    %887 = vdwg.mxu0
    %v888 = vadd.f32 %v719, %v886
    %v889 = vxor.u32 %v888, 2147483648
    %v890 = vmul.f32 %v889, 1.442695
    %v891 = vpow.pop %v890
    %v892 = vadd.f32 %v891, 1.0
    %v893 = vrcp.pop %v892
    %v894 = vmul.f32 %v892, %v893
    %v895 = vsub.f32 1.0, %v894
    %v896 = vmul.f32 %v893, %v895
    %v897 = vadd.f32 %v893, %v896
    %vm898 = vweird.f32 %v892
    %vm899 = vweird.f32 %v893
    %vm900 = vmor %vm898, %vm899
    %v901 = vsel %vm900, %v893, %v897
    %v902 = vand.u32 2147483647, %v892
    %vm903 = vcmp.eq.f32.partialorder %v902, 8.507059e+37
    %v904 = vand.u32 %v892, 2147483648
    %v905 = vor.u32 1.1754944e-38, %v904
    %v906 = vsel %vm903, %v905, %v901
    %v907 = vmul.f32 1.0, %v906
    %v908 = vmul.f32 %v907, 2.0
    %v909 = vsub.f32 %v908, 1.0
    %v910 = vmul.f32 %v907, %v854
    %912 = vrot.lane.b32.xlu0 %v909, 64
    %v913 = vpop.permute.xlu0 %912
    %v915 = vmul.f32 %v907, %v913
    %917 = vrot.lane.b32.xlu0 %v915, 32
    %v918 = vpop.permute.xlu0 %917
    %v920 = vadd.f32 %v910, %v918
    %v921 = vtanh.pop %v920
    %923 = vrot.lane.b32.xlu0 %v921, 64
    %v924 = vpop.permute.xlu0 %923
    %v926 = vmul.f32 %v907, %v924
    %928 = vrot.lane.b32.xlu0 %v926, 32
    %v929 = vpop.permute.xlu0 %928
    %931 = vst.msk [vmem:[%s4 + $0x10] sm:$0xff] %vm53, %v929
    %v932 = vsel %vm53, %v929, 0
    %934 = vmatpush.msra.mxu0 0.0
    %935 = vmatpush.msra.mxu0 0.0
    %936 = vmatpush.msra.mxu0 0.0
    %937 = vmatpush.msra.mxu0 0.0
    %938 = vmatpush.msra.mxu0 0.0
    %939 = vmatpush.msra.mxu0 0.0
    %940 = vmatpush.msra.mxu0 0.0
    %941 = vmatpush.msra.mxu0 0.0
    %942 = vmatpush.msra.mxu0 0.0
    %943 = vmatpush.msra.mxu0 0.0
    %944 = vmatpush.msra.mxu0 0.0
    %945 = vmatpush.msra.mxu0 0.0
    %946 = vmatpush.msra.mxu0 %v657
    %947 = vmatpush.msra.mxu0 %v656
    %948 = vmatpush.msra.mxu0 %v655
    %949 = vmatpush.msra.mxu0 %v654
    %950 = vmatmul.f32.gmra.mxu0 %v932
    %v951 = vpop.f32.mrf.mxu0
    %v952 = vadd.f32 0.0, %v951
    %953 = vdwg.mxu0
    %v954 = vadd.f32 %v722, %v952
    %v955 = vxor.u32 %v954, 2147483648
    %v956 = vmul.f32 %v955, 1.442695
    %v957 = vpow.pop %v956
    %v958 = vadd.f32 %v957, 1.0
    %v959 = vrcp.pop %v958
    %v960 = vmul.f32 %v958, %v959
    %v961 = vsub.f32 1.0, %v960
    %v962 = vmul.f32 %v959, %v961
    %v963 = vadd.f32 %v959, %v962
    %vm964 = vweird.f32 %v958
    %vm965 = vweird.f32 %v959
    %vm966 = vmor %vm964, %vm965
    %v967 = vsel %vm966, %v959, %v963
    %v968 = vand.u32 2147483647, %v958
    %vm969 = vcmp.eq.f32.partialorder %v968, 8.507059e+37
    %v970 = vand.u32 %v958, 2147483648
    %v971 = vor.u32 1.1754944e-38, %v970
    %v972 = vsel %vm969, %v971, %v967
    %v973 = vmul.f32 1.0, %v972
    %v974 = vmul.f32 %v973, 2.0
    %v975 = vsub.f32 %v974, 1.0
    %v976 = vmul.f32 %v973, %v920
    %978 = vrot.lane.b32.xlu0 %v975, 64
    %v979 = vpop.permute.xlu0 %978
    %v981 = vmul.f32 %v973, %v979
    %983 = vrot.lane.b32.xlu0 %v981, 32
    %v984 = vpop.permute.xlu0 %983
    %v986 = vadd.f32 %v976, %v984
    %v987 = vtanh.pop %v986
    %989 = vrot.lane.b32.xlu0 %v987, 64
    %v990 = vpop.permute.xlu0 %989
    %v992 = vmul.f32 %v973, %v990
    %994 = vrot.lane.b32.xlu0 %v992, 32
    %v995 = vpop.permute.xlu0 %994
    %997 = vst.msk [vmem:[%s4 + $0x18] sm:$0xff] %vm53, %v995
    %v998 = vsel %vm53, %v995, 0
    %1000 = vmatpush.msra.mxu0 0.0
    %1001 = vmatpush.msra.mxu0 0.0
    %1002 = vmatpush.msra.mxu0 0.0
    %1003 = vmatpush.msra.mxu0 0.0
    %1004 = vmatpush.msra.mxu0 0.0
    %1005 = vmatpush.msra.mxu0 0.0
    %1006 = vmatpush.msra.mxu0 0.0
    %1007 = vmatpush.msra.mxu0 0.0
    %1008 = vmatpush.msra.mxu0 0.0
    %1009 = vmatpush.msra.mxu0 0.0
    %1010 = vmatpush.msra.mxu0 0.0
    %1011 = vmatpush.msra.mxu0 0.0
    %1012 = vmatpush.msra.mxu0 %v657
    %1013 = vmatpush.msra.mxu0 %v656
    %1014 = vmatpush.msra.mxu0 %v655
    %1015 = vmatpush.msra.mxu0 %v654
    %1016 = vmatmul.f32.gmra.mxu0 %v998
    %v1017 = vpop.f32.mrf.mxu0
    %v1018 = vadd.f32 0.0, %v1017
    %1019 = vdwg.mxu0
    %v1020 = vadd.f32 %v725, %v1018
    %v1021 = vxor.u32 %v1020, 2147483648
    %v1022 = vmul.f32 %v1021, 1.442695
    %v1023 = vpow.pop %v1022
    %v1024 = vadd.f32 %v1023, 1.0
    %v1025 = vrcp.pop %v1024
    %v1026 = vmul.f32 %v1024, %v1025
    %v1027 = vsub.f32 1.0, %v1026
    %v1028 = vmul.f32 %v1025, %v1027
    %v1029 = vadd.f32 %v1025, %v1028
    %vm1030 = vweird.f32 %v1024
    %vm1031 = vweird.f32 %v1025
    %vm1032 = vmor %vm1030, %vm1031
    %v1033 = vsel %vm1032, %v1025, %v1029
    %v1034 = vand.u32 2147483647, %v1024
    %vm1035 = vcmp.eq.f32.partialorder %v1034, 8.507059e+37
    %v1036 = vand.u32 %v1024, 2147483648
    %v1037 = vor.u32 1.1754944e-38, %v1036
    %v1038 = vsel %vm1035, %v1037, %v1033
    %v1039 = vmul.f32 1.0, %v1038
    %v1040 = vmul.f32 %v1039, 2.0
    %v1041 = vsub.f32 %v1040, 1.0
    %v1042 = vmul.f32 %v1039, %v986
    %1044 = vrot.lane.b32.xlu0 %v1041, 64
    %v1045 = vpop.permute.xlu0 %1044
    %v1047 = vmul.f32 %v1039, %v1045
    %1049 = vrot.lane.b32.xlu0 %v1047, 32
    %v1050 = vpop.permute.xlu0 %1049
    %v1052 = vadd.f32 %v1042, %v1050
    %v1053 = vtanh.pop %v1052
    %1055 = vrot.lane.b32.xlu0 %v1053, 64
    %v1056 = vpop.permute.xlu0 %1055
    %v1058 = vmul.f32 %v1039, %v1056
    %1060 = vrot.lane.b32.xlu0 %v1058, 32
    %v1061 = vpop.permute.xlu0 %1060
    %1063 = vst.msk [vmem:[%s4 + $0x20] sm:$0xff] %vm53, %v1061
    %v1064 = vsel %vm53, %v1061, 0
    %1066 = vmatpush.msra.mxu0 0.0
    %1067 = vmatpush.msra.mxu0 0.0
    %1068 = vmatpush.msra.mxu0 0.0
    %1069 = vmatpush.msra.mxu0 0.0
    %1070 = vmatpush.msra.mxu0 0.0
    %1071 = vmatpush.msra.mxu0 0.0
    %1072 = vmatpush.msra.mxu0 0.0
    %1073 = vmatpush.msra.mxu0 0.0
    %1074 = vmatpush.msra.mxu0 0.0
    %1075 = vmatpush.msra.mxu0 0.0
    %1076 = vmatpush.msra.mxu0 0.0
    %1077 = vmatpush.msra.mxu0 0.0
    %1078 = vmatpush.msra.mxu0 %v657
    %1079 = vmatpush.msra.mxu0 %v656
    %1080 = vmatpush.msra.mxu0 %v655
    %1081 = vmatpush.msra.mxu0 %v654
    %1082 = vmatmul.f32.gmra.mxu0 %v1064
    %v1083 = vpop.f32.mrf.mxu0
    %v1084 = vadd.f32 0.0, %v1083
    %1085 = vdwg.mxu0
    %v1086 = vadd.f32 %v728, %v1084
    %v1087 = vxor.u32 %v1086, 2147483648
    %v1088 = vmul.f32 %v1087, 1.442695
    %v1089 = vpow.pop %v1088
    %v1090 = vadd.f32 %v1089, 1.0
    %v1091 = vrcp.pop %v1090
    %v1092 = vmul.f32 %v1090, %v1091
    %v1093 = vsub.f32 1.0, %v1092
    %v1094 = vmul.f32 %v1091, %v1093
    %v1095 = vadd.f32 %v1091, %v1094
    %vm1096 = vweird.f32 %v1090
    %vm1097 = vweird.f32 %v1091
    %vm1098 = vmor %vm1096, %vm1097
    %v1099 = vsel %vm1098, %v1091, %v1095
    %v1100 = vand.u32 2147483647, %v1090
    %vm1101 = vcmp.eq.f32.partialorder %v1100, 8.507059e+37
    %v1102 = vand.u32 %v1090, 2147483648
    %v1103 = vor.u32 1.1754944e-38, %v1102
    %v1104 = vsel %vm1101, %v1103, %v1099
    %v1105 = vmul.f32 1.0, %v1104
    %v1106 = vmul.f32 %v1105, 2.0
    %v1107 = vsub.f32 %v1106, 1.0
    %v1108 = vmul.f32 %v1105, %v1052
    %1110 = vrot.lane.b32.xlu0 %v1107, 64
    %v1111 = vpop.permute.xlu0 %1110
    %v1113 = vmul.f32 %v1105, %v1111
    %1115 = vrot.lane.b32.xlu0 %v1113, 32
    %v1116 = vpop.permute.xlu0 %1115
    %v1118 = vadd.f32 %v1108, %v1116
    %v1119 = vtanh.pop %v1118
    %1121 = vrot.lane.b32.xlu0 %v1119, 64
    %v1122 = vpop.permute.xlu0 %1121
    %v1124 = vmul.f32 %v1105, %v1122
    %1126 = vrot.lane.b32.xlu0 %v1124, 32
    %v1127 = vpop.permute.xlu0 %1126
    %1129 = vst.msk [vmem:[%s4 + $0x28] sm:$0xff] %vm53, %v1127
    %v1130 = vsel %vm53, %v1127, 0
    %1132 = vmatpush.msra.mxu0 0.0
    %1133 = vmatpush.msra.mxu0 0.0
    %1134 = vmatpush.msra.mxu0 0.0
    %1135 = vmatpush.msra.mxu0 0.0
    %1136 = vmatpush.msra.mxu0 0.0
    %1137 = vmatpush.msra.mxu0 0.0
    %1138 = vmatpush.msra.mxu0 0.0
    %1139 = vmatpush.msra.mxu0 0.0
    %1140 = vmatpush.msra.mxu0 0.0
    %1141 = vmatpush.msra.mxu0 0.0
    %1142 = vmatpush.msra.mxu0 0.0
    %1143 = vmatpush.msra.mxu0 0.0
    %1144 = vmatpush.msra.mxu0 %v657
    %1145 = vmatpush.msra.mxu0 %v656
    %1146 = vmatpush.msra.mxu0 %v655
    %1147 = vmatpush.msra.mxu0 %v654
    %1148 = vmatmul.f32.gmra.mxu0 %v1130
    %v1149 = vpop.f32.mrf.mxu0
    %v1150 = vadd.f32 0.0, %v1149
    %1151 = vdwg.mxu0
    %v1152 = vadd.f32 %v731, %v1150
    %v1153 = vxor.u32 %v1152, 2147483648
    %v1154 = vmul.f32 %v1153, 1.442695
    %v1155 = vpow.pop %v1154
    %v1156 = vadd.f32 %v1155, 1.0
    %v1157 = vrcp.pop %v1156
    %v1158 = vmul.f32 %v1156, %v1157
    %v1159 = vsub.f32 1.0, %v1158
    %v1160 = vmul.f32 %v1157, %v1159
    %v1161 = vadd.f32 %v1157, %v1160
    %vm1162 = vweird.f32 %v1156
    %vm1163 = vweird.f32 %v1157
    %vm1164 = vmor %vm1162, %vm1163
    %v1165 = vsel %vm1164, %v1157, %v1161
    %v1166 = vand.u32 2147483647, %v1156
    %vm1167 = vcmp.eq.f32.partialorder %v1166, 8.507059e+37
    %v1168 = vand.u32 %v1156, 2147483648
    %v1169 = vor.u32 1.1754944e-38, %v1168
    %v1170 = vsel %vm1167, %v1169, %v1165
    %v1171 = vmul.f32 1.0, %v1170
    %v1172 = vmul.f32 %v1171, 2.0
    %v1173 = vsub.f32 %v1172, 1.0
    %v1174 = vmul.f32 %v1171, %v1118
    %1176 = vrot.lane.b32.xlu0 %v1173, 64
    %v1177 = vpop.permute.xlu0 %1176
    %v1179 = vmul.f32 %v1171, %v1177
    %1181 = vrot.lane.b32.xlu0 %v1179, 32
    %v1182 = vpop.permute.xlu0 %1181
    %v1184 = vadd.f32 %v1174, %v1182
    %v1185 = vtanh.pop %v1184
    %1187 = vrot.lane.b32.xlu0 %v1185, 64
    %v1188 = vpop.permute.xlu0 %1187
    %v1190 = vmul.f32 %v1171, %v1188
    %1192 = vrot.lane.b32.xlu0 %v1190, 32
    %v1193 = vpop.permute.xlu0 %1192
    %1195 = vst.msk [vmem:[%s4 + $0x30] sm:$0xff] %vm53, %v1193
    %v1196 = vsel %vm53, %v1193, 0
    %1198 = vmatpush.msra.mxu0 0.0
    %1199 = vmatpush.msra.mxu0 0.0
    %1200 = vmatpush.msra.mxu0 0.0
    %1201 = vmatpush.msra.mxu0 0.0
    %1202 = vmatpush.msra.mxu0 0.0
    %1203 = vmatpush.msra.mxu0 0.0
    %1204 = vmatpush.msra.mxu0 0.0
    %1205 = vmatpush.msra.mxu0 0.0
    %1206 = vmatpush.msra.mxu0 0.0
    %1207 = vmatpush.msra.mxu0 0.0
    %1208 = vmatpush.msra.mxu0 0.0
    %1209 = vmatpush.msra.mxu0 0.0
    %1210 = vmatpush.msra.mxu0 %v657
    %1211 = vmatpush.msra.mxu0 %v656
    %1212 = vmatpush.msra.mxu0 %v655
    %1213 = vmatpush.msra.mxu0 %v654
    %1214 = vmatmul.f32.gmra.mxu0 %v1196
    %v1215 = vpop.f32.mrf.mxu0
    %v1216 = vadd.f32 0.0, %v1215
    %1217 = vdwg.mxu0
    %v1218 = vadd.f32 %v734, %v1216
    %v1219 = vxor.u32 %v1218, 2147483648
    %v1220 = vmul.f32 %v1219, 1.442695
    %v1221 = vpow.pop %v1220
    %v1222 = vadd.f32 %v1221, 1.0
    %v1223 = vrcp.pop %v1222
    %v1224 = vmul.f32 %v1222, %v1223
    %v1225 = vsub.f32 1.0, %v1224
    %v1226 = vmul.f32 %v1223, %v1225
    %v1227 = vadd.f32 %v1223, %v1226
    %vm1228 = vweird.f32 %v1222
    %vm1229 = vweird.f32 %v1223
    %vm1230 = vmor %vm1228, %vm1229
    %v1231 = vsel %vm1230, %v1223, %v1227
    %v1232 = vand.u32 2147483647, %v1222
    %vm1233 = vcmp.eq.f32.partialorder %v1232, 8.507059e+37
    %v1234 = vand.u32 %v1222, 2147483648
    %v1235 = vor.u32 1.1754944e-38, %v1234
    %v1236 = vsel %vm1233, %v1235, %v1231
    %v1237 = vmul.f32 1.0, %v1236
    %v1238 = vmul.f32 %v1237, 2.0
    %v1239 = vsub.f32 %v1238, 1.0
    %v1240 = vmul.f32 %v1237, %v1184
    %1242 = vrot.lane.b32.xlu0 %v1239, 64
    %v1243 = vpop.permute.xlu0 %1242
    %v1245 = vmul.f32 %v1237, %v1243
    %1247 = vrot.lane.b32.xlu0 %v1245, 32
    %v1248 = vpop.permute.xlu0 %1247
    %v1250 = vadd.f32 %v1240, %v1248
    %v1251 = vtanh.pop %v1250
    %1253 = vrot.lane.b32.xlu0 %v1251, 64
    %v1254 = vpop.permute.xlu0 %1253
    %v1256 = vmul.f32 %v1237, %v1254
    %1258 = vrot.lane.b32.xlu0 %v1256, 32
    %v1259 = vpop.permute.xlu0 %1258
    %1261 = vst.msk [vmem:[%s4 + $0x38] sm:$0xff] %vm53, %v1259
    // Predicated region
    $region22: #{block_lstm_forward.1} parent=1 // pred_check
      _
    $region23: #{block_lstm_forward.1} parent=1 // pred_check_branch
      %1263 = sbr.rel (0) target = $region25
    $region24: #{block_lstm_forward.1} parent=1 // pred_region
      _
    $region25: #{block_lstm_forward.1} parent=1 // pred_fallthru
      _
    // Predicated region
    $region26: #{block_lstm_forward.1} parent=1 // pred_check
      _
    $region27: #{block_lstm_forward.1} parent=1 // pred_check_branch
      %1265 = sbr.rel (0) target = $region29
    $region28: #{block_lstm_forward.1} parent=1 // pred_region
      _
    $region29: #{block_lstm_forward.1} parent=1 // pred_fallthru
      _
    %1266 = vsyncpa [#allocation4], 1

</llo_original>
